<compile_context>
chip_gen: v7x
topology: tpu7x:2x2x1
jax: 0.10.0
libtpu: 0.0.40
codegen_flags: <defaults>
</compile_context>

<pallas_src>
import jax
import jax.numpy as jnp
from jax.experimental import pallas as pl
from jax.experimental.pallas import tpu as pltpu

# --- PDE constants (same names/values as the reference script) -------------
B_CONST = 0.5   # b
C_CONST = 0.5   # c
SIGMA   = 1.0   # sigma
B_F     = 0.5   # b_f
C_F     = 0.9   # c_f

HIDDEN = 100
LANES  = 128          # hidden padded to lane width (padded lanes stay inert)

# rows of the packed (CONST_ROWS, LANES) constant slab
ROW_W1_T, ROW_W1_X, ROW_W2_T, ROW_W2_X = 0, 1, 2, 3
ROW_B1, ROW_B2                          = 4, 5
ROW_TGRID, ROW_ALPHA_A, ROW_ALPHA_B     = 6, 7, 8
ROW_D2_W1X2, ROW_D2_W12X, ROW_D2_W2X2   = 9, 10, 11
ROW_EH                                  = 12
ROW_W3_BLK                              = 16   # 8-row aligned MXU lhs block
CONST_ROWS                              = 24

TGRID_PAD = 1e9        # sentinel on padded time-grid lanes -> never matches


def _pde_kernel(x_ref, cst_ref, o_ref):
    # x_ref  : (TB, 2)    rows = [t, s], batch on sublanes
    # cst_ref: (24, 128)  packed weights / biases / policy tables / MXU lhs
    # o_ref  : (2, TB)    row 0 = network output f(x), row 1 = pde residual
    tb = x_ref.shape[0]

    w1_t = cst_ref[ROW_W1_T:ROW_W1_T + 1, :]       # (1, 128)
    w1_x = cst_ref[ROW_W1_X:ROW_W1_X + 1, :]
    w2_t = cst_ref[ROW_W2_T:ROW_W2_T + 1, :]
    w2_x = cst_ref[ROW_W2_X:ROW_W2_X + 1, :]
    b1r  = cst_ref[ROW_B1:ROW_B1 + 1, :]
    b2r  = cst_ref[ROW_B2:ROW_B2 + 1, :]
    tg   = cst_ref[ROW_TGRID:ROW_TGRID + 1, :]
    aa   = cst_ref[ROW_ALPHA_A:ROW_ALPHA_A + 1, :]
    ab   = cst_ref[ROW_ALPHA_B:ROW_ALPHA_B + 1, :]
    w1x2 = cst_ref[ROW_D2_W1X2:ROW_D2_W1X2 + 1, :]   # -sigma^2 * w1_x^2
    w12x = cst_ref[ROW_D2_W12X:ROW_D2_W12X + 1, :]   #  sigma^2 * w1_x*w2_x
    w2x2 = cst_ref[ROW_D2_W2X2:ROW_D2_W2X2 + 1, :]   #  0.5*sigma^2 * w2_x^2
    eh   = cst_ref[ROW_EH:ROW_EH + 1, :]             # one-hot at lane HIDDEN
    w3b  = cst_ref[ROW_W3_BLK:ROW_W3_BLK + 8, :]     # (8,128) MXU lhs block

    x = x_ref[...]
    t = x[:, 0:1]                                   # (TB, 1)
    s = x[:, 1:2]
    # hoisted lane-broadcasts (reused 2-3x; JAX does not CSE broadcast_in_dim)
    t_b = jnp.broadcast_to(t, (tb, LANES))
    s_b = jnp.broadcast_to(s, (tb, LANES))

    # ---- alpha_t(s) lookup: round t to 2 decimals, fused select + reduce ---
    # TODO(synk): original self.alphas is a python list of arbitrary nn.Module
    # policies; modeled here as per-timestep linear policies a_i * s + b_i,
    # and t is assumed to lie on the time grid (off-grid t -> alpha = 0).
    t_r = jnp.floor(t * 100.0 + 0.5) * 0.01                  # (TB, 1)
    match = jnp.abs(t_r - tg) < 1e-6                          # (TB, 128)
    alpha = jnp.sum(jnp.where(match, aa * s_b + ab, 0.0),
                    axis=-1, keepdims=True)                   # (TB, 1)

    # ---- forward --------------------------------------------------------
    z1 = t_b * w1_t + s_b * w1_x + b1r                        # (TB, 128)
    z2 = t_b * w2_t + s_b * w2_x + b2r
    h1 = jnp.tanh(z1)
    h2 = 0.5 + 0.5 * jnp.tanh(0.5 * z2)      # sigmoid via tanh: 1 EUP push
    h  = h1 * h2

    # ---- closed-form derivative lane factors (CSE'd) ----------------------
    t1p = 1.0 - h1 * h1                      # tanh'
    s1p = h2 - h2 * h2                       # sigmoid'
    u = t1p * h2
    v = h1 * s1p
    dh_dt = u * w1_t + v * w2_t
    dh_dx = u * w1_x + v * w2_x
    c1 = h1 * u                              # pairs with -sigma^2*w1x^2
    c2 = t1p * s1p                           # pairs with  sigma^2*w1x*w2x
    c3 = v - 2.0 * (v * h2)                  # pairs with 0.5*sigma^2*w2x^2

    drift = B_CONST * s + C_CONST * alpha                    # (TB, 1)
    src   = B_F * (s * s) + C_F * (alpha * alpha)            # (TB, 1)

    # lane vectors whose contraction with w3 gives f(x) and the pde residual.
    # Padded lanes are exactly 0; lane HIDDEN carries the "+b3" / "+src" term.
    out_rhs = h + eh                                          # (TB, 128)
    pde_rhs = (dh_dt + drift * dh_dx
               + c1 * w1x2 + c2 * w12x + c3 * w2x2
               + src * eh)                                    # (TB, 128)

    # ---- lane-dense reductions on the (otherwise idle) MXU -----------------
    dn = (((1,), (1,)), ((), ()))            # contract lane dims (trans-B)
    mm_out = jax.lax.dot_general(w3b, out_rhs, dn,
                                 precision=jax.lax.Precision.HIGHEST,
                                 preferred_element_type=jnp.float32)  # (8, TB)
    mm_pde = jax.lax.dot_general(w3b, pde_rhs, dn,
                                 precision=jax.lax.Precision.HIGHEST,
                                 preferred_element_type=jnp.float32)  # (8, TB)

    o_ref[0:1, :] = mm_out[0:1, :]           # row 0 of lhs block = [w3 | b3@H]
    o_ref[1:2, :] = mm_pde[1:2, :]           # row 1 of lhs block = [w3 | 1 @H]


# --------------------------- host-side packing ------------------------------
def pack_constants(params, alphas_a, alphas_b, timegrid):
    """Pack weights/biases + policy tables into one (24,128) slab (do ONCE)."""
    w1, b1, w2, b2, w3, b3 = params
    cst = jnp.zeros((CONST_ROWS, LANES), jnp.float32)

    def put(c, row, vec):
        vec = jnp.asarray(vec, jnp.float32).reshape(-1)
        return c.at[row, :vec.shape[0]].set(vec)

    cst = put(cst, ROW_W1_T, w1[:, 0])
    cst = put(cst, ROW_W1_X, w1[:, 1])
    cst = put(cst, ROW_W2_T, w2[:, 0])
    cst = put(cst, ROW_W2_X, w2[:, 1])
    cst = put(cst, ROW_B1, b1)
    cst = put(cst, ROW_B2, b2)

    # constant-only second-derivative products with the PDE 0.5*sigma^2 factor
    # (and the tanh'' factor -2) folded in at pack time.
    w1x = jnp.asarray(w1[:, 1], jnp.float32)
    w2x = jnp.asarray(w2[:, 1], jnp.float32)
    cst = put(cst, ROW_D2_W1X2, -(SIGMA ** 2) * w1x * w1x)
    cst = put(cst, ROW_D2_W12X, (SIGMA ** 2) * w1x * w2x)
    cst = put(cst, ROW_D2_W2X2, 0.5 * (SIGMA ** 2) * w2x * w2x)

    # one-hot injection lane (forward value there is exactly 0)
    cst = cst.at[ROW_EH, HIDDEN].set(1.0)

    # time grid (sentinel padded) and per-timestep linear-policy tables
    cst = cst.at[ROW_TGRID, :].set(jnp.float32(TGRID_PAD))
    cst = put(cst, ROW_TGRID, timegrid)
    cst = put(cst, ROW_ALPHA_A, alphas_a)
    cst = put(cst, ROW_ALPHA_B, alphas_b)

    # aligned (8,128) MXU lhs block: row 0 -> output, row 1 -> pde
    w3v = jnp.asarray(w3, jnp.float32).reshape(-1)
    b3v = jnp.asarray(b3, jnp.float32).reshape(-1)[0]
    cst = put(cst, ROW_W3_BLK, w3v)
    cst = cst.at[ROW_W3_BLK, HIDDEN].set(b3v)
    cst = put(cst, ROW_W3_BLK + 1, w3v)
    cst = cst.at[ROW_W3_BLK + 1, HIDDEN].set(1.0)
    return cst


def model_pde_one_batch(x, packed_constants, *, tile=None):
    """x: (B, 2) rows of [t, s]; returns (output (B,), pde (B,))."""
    x = jnp.asarray(x, jnp.float32)
    B = x.shape[0]
    if tile is None:
        # B <= 128: single grid step (amortizes the ~600-cycle per-step cost);
        # larger B: keep tile at 128 (bounded vreg live ranges) and rely on the
        # "parallel" grid axis for megacore sharding on v7x.
        tile = B if B <= 128 else 128
    assert tile % 8 == 0 and B % tile == 0, (B, tile)
    if B != tile:
        # lane-dense (2, tile) output blocks need a 128-lane multiple
        assert tile % 128 == 0, tile

    out = pl.pallas_call(
        _pde_kernel,
        out_shape=jax.ShapeDtypeStruct((2, B), jnp.float32),
        grid=(B // tile,),
        in_specs=[pl.BlockSpec((tile, 2), lambda i: (i, 0)),
                  pl.BlockSpec((CONST_ROWS, LANES), lambda i: (0, 0))],
        out_specs=pl.BlockSpec((2, tile), lambda i: (0, i)),
        compiler_params=pltpu.CompilerParams(
            dimension_semantics=("parallel",)),
    )(x, packed_constants)
    return out[0], out[1]


# ---------------- pure-JAX reference (autodiff, per sample) -----------------
def _net_out(xi, params):
    w1, b1, w2, b2, w3, b3 = params
    h1 = jnp.tanh(w1 @ xi + b1)
    h2 = jax.nn.sigmoid(w2 @ xi + b2)
    return (w3 @ (h1 * h2) + b3)[0]


def _reference(xi, params, alphas_a, alphas_b, timegrid):
    t_r = jnp.floor(xi[0] * 100.0 + 0.5) / 100.0
    # assumes t lies on the time grid (as in the PyTorch np.where lookup)
    ind = jnp.argmax(jnp.abs(timegrid - t_r) < 1e-6)
    alpha = alphas_a[ind] * xi[1] + alphas_b[ind]
    out = _net_out(xi, params)
    g = jax.grad(_net_out)(xi, params)
    hess = jax.hessian(_net_out)(xi, params)
    df_dt, df_dx, df_dxdx = g[0], g[1], hess[1, 1]
    pde = (B_F * xi[1] ** 2 + C_F * alpha ** 2 + df_dt
           + 0.5 * SIGMA ** 2 * df_dxdx
           + (B_CONST * xi[1] + C_CONST * alpha) * df_dx)
    return out, pde


if __name__ == "__main__":
    key = jax.random.PRNGKey(0)
    k = jax.random.split(key, 10)

    # deterministic "nn.Linear"-style parameters
    w1 = jax.random.uniform(k[0], (HIDDEN, 2), jnp.float32, -0.7, 0.7)
    b1 = jax.random.uniform(k[1], (HIDDEN,),   jnp.float32, -0.7, 0.7)
    w2 = jax.random.uniform(k[2], (HIDDEN, 2), jnp.float32, -0.7, 0.7)
    b2 = jax.random.uniform(k[3], (HIDDEN,),   jnp.float32, -0.7, 0.7)
    w3 = jax.random.uniform(k[4], (1, HIDDEN), jnp.float32, -0.1, 0.1)
    b3 = jax.random.uniform(k[5], (1,),        jnp.float32, -0.1, 0.1)
    params = (w1, b1, w2, b2, w3, b3)

    # time grid and per-timestep (linear) policies
    n_t = 8
    timegrid = jnp.round(jnp.arange(n_t, dtype=jnp.float32) * 0.1, 2)
    alphas_a = jax.random.uniform(k[6], (n_t,), jnp.float32, -1.0, 1.0)
    alphas_b = jax.random.uniform(k[7], (n_t,), jnp.float32, -1.0, 1.0)

    # batch of records x = [t, s]; every t lies on the time grid
    B = 64
    t_idx = jax.random.randint(k[8], (B,), 0, n_t)
    t_batch = timegrid[t_idx]
    s_batch = jax.random.uniform(k[9], (B,), jnp.float32, -2.0, 2.0)
    x = jnp.stack([t_batch, s_batch], axis=1)            # (B, 2)

    # pre-pack once (hoisted out of the per-call path)
    cst = pack_constants(params, alphas_a, alphas_b, timegrid)

    out, pde = model_pde_one_batch(x, cst)               # tile=B -> grid=1
    out = jax.block_until_ready(out)
    pde = jax.block_until_ready(pde)

    out_ref, pde_ref = jax.vmap(
        lambda xi: _reference(xi, params, alphas_a, alphas_b, timegrid))(x)
    assert jnp.allclose(out, out_ref, rtol=2e-3, atol=2e-3), (out, out_ref)
    assert jnp.allclose(pde, pde_ref, rtol=2e-3, atol=2e-3), (pde, pde_ref)

    print("KERNEL_OK")
</pallas_src>

<mosaic_0001>
module attributes {stable_mosaic.version = 11 : i64} {
  func.func @_pde_kernel(%arg0: i32, %arg1: memref<64x2xf32, #tpu.memory_space<vmem>>, %arg2: memref<24x128xf32, #tpu.memory_space<vmem>>, %arg3: memref<2x64xf32, #tpu.memory_space<vmem>>) attributes {dimension_semantics = [#tpu.dimension_semantics<parallel>], iteration_bounds = array<i64: 1>, scalar_prefetch = 0 : i64, scratch_operands = 0 : i64, tpu.core_type = #tpu.core_type<tc>, window_params = [{transform_indices = @transform_0, window_bounds = array<i64: 64, 2>}, {pipeline_mode = #tpu.pipeline_mode<synchronous>, transform_indices = @transform_1, window_bounds = array<i64: 24, 128>}, {transform_indices = @transform_2, window_bounds = array<i64: 2, 64>}]} {
    %c0 = arith.constant 0 : index
    %c0_0 = arith.constant 0 : index
    %0 = vector.load %arg2[%c0, %c0_0] : memref<24x128xf32, #tpu.memory_space<vmem>>, vector<1x128xf32>
    %c1 = arith.constant 1 : index
    %c0_1 = arith.constant 0 : index
    %1 = vector.load %arg2[%c1, %c0_1] : memref<24x128xf32, #tpu.memory_space<vmem>>, vector<1x128xf32>
    %c2 = arith.constant 2 : index
    %c0_2 = arith.constant 0 : index
    %2 = vector.load %arg2[%c2, %c0_2] : memref<24x128xf32, #tpu.memory_space<vmem>>, vector<1x128xf32>
    %c3 = arith.constant 3 : index
    %c0_3 = arith.constant 0 : index
    %3 = vector.load %arg2[%c3, %c0_3] : memref<24x128xf32, #tpu.memory_space<vmem>>, vector<1x128xf32>
    %c4 = arith.constant 4 : index
    %c0_4 = arith.constant 0 : index
    %4 = vector.load %arg2[%c4, %c0_4] : memref<24x128xf32, #tpu.memory_space<vmem>>, vector<1x128xf32>
    %c5 = arith.constant 5 : index
    %c0_5 = arith.constant 0 : index
    %5 = vector.load %arg2[%c5, %c0_5] : memref<24x128xf32, #tpu.memory_space<vmem>>, vector<1x128xf32>
    %c6 = arith.constant 6 : index
    %c0_6 = arith.constant 0 : index
    %6 = vector.load %arg2[%c6, %c0_6] : memref<24x128xf32, #tpu.memory_space<vmem>>, vector<1x128xf32>
    %c7 = arith.constant 7 : index
    %c0_7 = arith.constant 0 : index
    %7 = vector.load %arg2[%c7, %c0_7] : memref<24x128xf32, #tpu.memory_space<vmem>>, vector<1x128xf32>
    %c8 = arith.constant 8 : index
    %c0_8 = arith.constant 0 : index
    %8 = vector.load %arg2[%c8, %c0_8] : memref<24x128xf32, #tpu.memory_space<vmem>>, vector<1x128xf32>
    %c9 = arith.constant 9 : index
    %c0_9 = arith.constant 0 : index
    %9 = vector.load %arg2[%c9, %c0_9] : memref<24x128xf32, #tpu.memory_space<vmem>>, vector<1x128xf32>
    %c10 = arith.constant 10 : index
    %c0_10 = arith.constant 0 : index
    %10 = vector.load %arg2[%c10, %c0_10] : memref<24x128xf32, #tpu.memory_space<vmem>>, vector<1x128xf32>
    %c11 = arith.constant 11 : index
    %c0_11 = arith.constant 0 : index
    %11 = vector.load %arg2[%c11, %c0_11] : memref<24x128xf32, #tpu.memory_space<vmem>>, vector<1x128xf32>
    %c12 = arith.constant 12 : index
    %c0_12 = arith.constant 0 : index
    %12 = vector.load %arg2[%c12, %c0_12] : memref<24x128xf32, #tpu.memory_space<vmem>>, vector<1x128xf32>
    %c16 = arith.constant 16 : index
    %c0_13 = arith.constant 0 : index
    %13 = vector.load %arg2[%c16, %c0_13] : memref<24x128xf32, #tpu.memory_space<vmem>>, vector<8x128xf32>
    %c0_14 = arith.constant 0 : index
    %c0_15 = arith.constant 0 : index
    %14 = vector.load %arg1[%c0_14, %c0_15] : memref<64x2xf32, #tpu.memory_space<vmem>>, vector<64x2xf32>
    %15 = vector.extract_strided_slice %14 {offsets = [0, 0], sizes = [64, 1], strides = [1, 1]} : vector<64x2xf32> to vector<64x1xf32>
    %16 = vector.extract_strided_slice %14 {offsets = [0, 1], sizes = [64, 1], strides = [1, 1]} : vector<64x2xf32> to vector<64x1xf32>
    %17 = vector.shape_cast %15 : vector<64x1xf32> to vector<64x1xf32>
    %18 = vector.broadcast %17 : vector<64x1xf32> to vector<64x128xf32>
    %19 = vector.shape_cast %16 : vector<64x1xf32> to vector<64x1xf32>
    %20 = vector.broadcast %19 : vector<64x1xf32> to vector<64x128xf32>
    %cst = arith.constant 1.000000e+02 : f32
    %21 = vector.broadcast %cst : f32 to vector<64x1xf32>
    %22 = arith.mulf %15, %21 : vector<64x1xf32>
    %cst_16 = arith.constant 5.000000e-01 : f32
    %23 = vector.broadcast %cst_16 : f32 to vector<64x1xf32>
    %24 = arith.addf %22, %23 : vector<64x1xf32>
    %25 = math.floor %24 : vector<64x1xf32>
    %cst_17 = arith.constant 0.00999999977 : f32
    %26 = vector.broadcast %cst_17 : f32 to vector<64x1xf32>
    %27 = arith.mulf %25, %26 : vector<64x1xf32>
    %28 = vector.broadcast %27 : vector<64x1xf32> to vector<64x128xf32>
    %29 = vector.broadcast %6 : vector<1x128xf32> to vector<64x128xf32>
    %30 = arith.subf %28, %29 : vector<64x128xf32>
    %31 = math.absf %30 : vector<64x128xf32>
    %cst_18 = arith.constant 9.99999997E-7 : f32
    %32 = vector.broadcast %cst_18 : f32 to vector<64x128xf32>
    %33 = arith.cmpf olt, %31, %32 : vector<64x128xf32>
    %34 = vector.broadcast %7 : vector<1x128xf32> to vector<64x128xf32>
    %35 = arith.mulf %34, %20 : vector<64x128xf32>
    %36 = vector.broadcast %8 : vector<1x128xf32> to vector<64x128xf32>
    %37 = arith.addf %35, %36 : vector<64x128xf32>
    %cst_19 = arith.constant 0.000000e+00 : f32
    %38 = vector.broadcast %cst_19 : f32 to vector<64x128xf32>
    %39 = arith.select %33, %37, %38 : vector<64x128xi1>, vector<64x128xf32>
    %cst_20 = arith.constant dense<0.000000e+00> : vector<64xf32>
    %40 = vector.multi_reduction <add>, %39, %cst_20 [1] : vector<64x128xf32> to vector<64xf32>
    %41 = vector.shape_cast %40 : vector<64xf32> to vector<64x1xf32>
    %42 = vector.broadcast %0 : vector<1x128xf32> to vector<64x128xf32>
    %43 = arith.mulf %18, %42 : vector<64x128xf32>
    %44 = vector.broadcast %1 : vector<1x128xf32> to vector<64x128xf32>
    %45 = arith.mulf %20, %44 : vector<64x128xf32>
    %46 = arith.addf %43, %45 : vector<64x128xf32>
    %47 = vector.broadcast %4 : vector<1x128xf32> to vector<64x128xf32>
    %48 = arith.addf %46, %47 : vector<64x128xf32>
    %49 = vector.broadcast %2 : vector<1x128xf32> to vector<64x128xf32>
    %50 = arith.mulf %18, %49 : vector<64x128xf32>
    %51 = vector.broadcast %3 : vector<1x128xf32> to vector<64x128xf32>
    %52 = arith.mulf %20, %51 : vector<64x128xf32>
    %53 = arith.addf %50, %52 : vector<64x128xf32>
    %54 = vector.broadcast %5 : vector<1x128xf32> to vector<64x128xf32>
    %55 = arith.addf %53, %54 : vector<64x128xf32>
    %56 = math.tanh %48 : vector<64x128xf32>
    %cst_21 = arith.constant 5.000000e-01 : f32
    %57 = vector.broadcast %cst_21 : f32 to vector<64x128xf32>
    %58 = arith.mulf %57, %55 : vector<64x128xf32>
    %59 = math.tanh %58 : vector<64x128xf32>
    %cst_22 = arith.constant 5.000000e-01 : f32
    %60 = vector.broadcast %cst_22 : f32 to vector<64x128xf32>
    %61 = arith.mulf %60, %59 : vector<64x128xf32>
    %cst_23 = arith.constant 5.000000e-01 : f32
    %62 = vector.broadcast %cst_23 : f32 to vector<64x128xf32>
    %63 = arith.addf %62, %61 : vector<64x128xf32>
    %64 = arith.mulf %56, %63 : vector<64x128xf32>
    %65 = arith.mulf %56, %56 : vector<64x128xf32>
    %cst_24 = arith.constant 1.000000e+00 : f32
    %66 = vector.broadcast %cst_24 : f32 to vector<64x128xf32>
    %67 = arith.subf %66, %65 : vector<64x128xf32>
    %68 = arith.mulf %63, %63 : vector<64x128xf32>
    %69 = arith.subf %63, %68 : vector<64x128xf32>
    %70 = arith.mulf %67, %63 : vector<64x128xf32>
    %71 = arith.mulf %56, %69 : vector<64x128xf32>
    %72 = vector.broadcast %0 : vector<1x128xf32> to vector<64x128xf32>
    %73 = arith.mulf %70, %72 : vector<64x128xf32>
    %74 = vector.broadcast %2 : vector<1x128xf32> to vector<64x128xf32>
    %75 = arith.mulf %71, %74 : vector<64x128xf32>
    %76 = arith.addf %73, %75 : vector<64x128xf32>
    %77 = vector.broadcast %1 : vector<1x128xf32> to vector<64x128xf32>
    %78 = arith.mulf %70, %77 : vector<64x128xf32>
    %79 = vector.broadcast %3 : vector<1x128xf32> to vector<64x128xf32>
    %80 = arith.mulf %71, %79 : vector<64x128xf32>
    %81 = arith.addf %78, %80 : vector<64x128xf32>
    %82 = arith.mulf %56, %70 : vector<64x128xf32>
    %83 = arith.mulf %67, %69 : vector<64x128xf32>
    %84 = arith.mulf %71, %63 : vector<64x128xf32>
    %cst_25 = arith.constant 2.000000e+00 : f32
    %85 = vector.broadcast %cst_25 : f32 to vector<64x128xf32>
    %86 = arith.mulf %85, %84 : vector<64x128xf32>
    %87 = arith.subf %71, %86 : vector<64x128xf32>
    %cst_26 = arith.constant 5.000000e-01 : f32
    %88 = vector.broadcast %cst_26 : f32 to vector<64x1xf32>
    %89 = arith.mulf %88, %16 : vector<64x1xf32>
    %cst_27 = arith.constant 5.000000e-01 : f32
    %90 = vector.broadcast %cst_27 : f32 to vector<64x1xf32>
    %91 = arith.mulf %90, %41 : vector<64x1xf32>
    %92 = arith.addf %89, %91 : vector<64x1xf32>
    %93 = arith.mulf %16, %16 : vector<64x1xf32>
    %cst_28 = arith.constant 5.000000e-01 : f32
    %94 = vector.broadcast %cst_28 : f32 to vector<64x1xf32>
    %95 = arith.mulf %94, %93 : vector<64x1xf32>
    %96 = arith.mulf %41, %41 : vector<64x1xf32>
    %cst_29 = arith.constant 0.899999976 : f32
    %97 = vector.broadcast %cst_29 : f32 to vector<64x1xf32>
    %98 = arith.mulf %97, %96 : vector<64x1xf32>
    %99 = arith.addf %95, %98 : vector<64x1xf32>
    %100 = vector.broadcast %12 : vector<1x128xf32> to vector<64x128xf32>
    %101 = arith.addf %64, %100 : vector<64x128xf32>
    %102 = vector.broadcast %92 : vector<64x1xf32> to vector<64x128xf32>
    %103 = arith.mulf %102, %81 : vector<64x128xf32>
    %104 = arith.addf %76, %103 : vector<64x128xf32>
    %105 = vector.broadcast %9 : vector<1x128xf32> to vector<64x128xf32>
    %106 = arith.mulf %82, %105 : vector<64x128xf32>
    %107 = arith.addf %104, %106 : vector<64x128xf32>
    %108 = vector.broadcast %10 : vector<1x128xf32> to vector<64x128xf32>
    %109 = arith.mulf %83, %108 : vector<64x128xf32>
    %110 = arith.addf %107, %109 : vector<64x128xf32>
    %111 = vector.broadcast %11 : vector<1x128xf32> to vector<64x128xf32>
    %112 = arith.mulf %87, %111 : vector<64x128xf32>
    %113 = arith.addf %110, %112 : vector<64x128xf32>
    %114 = vector.broadcast %99 : vector<64x1xf32> to vector<64x128xf32>
    %115 = vector.broadcast %12 : vector<1x128xf32> to vector<64x128xf32>
    %116 = arith.mulf %114, %115 : vector<64x128xf32>
    %117 = arith.addf %113, %116 : vector<64x128xf32>
    %cst_30 = arith.constant dense<0.000000e+00> : vector<8x64xf32>
    %118 = tpu.matmul %13, %101, %cst_30 {dimension_numbers = #tpu.dot_dimension_numbers<[1], [1], [0], [0], [0, 0, 1, 0], [], []>, precision = #tpu.contract_precision<fp32>} : vector<8x128xf32>, vector<64x128xf32>, vector<8x64xf32> -> vector<8x64xf32>
    %cst_31 = arith.constant dense<0.000000e+00> : vector<8x64xf32>
    %119 = tpu.matmul %13, %117, %cst_31 {dimension_numbers = #tpu.dot_dimension_numbers<[1], [1], [0], [0], [0, 0, 1, 0], [], []>, precision = #tpu.contract_precision<fp32>} : vector<8x128xf32>, vector<64x128xf32>, vector<8x64xf32> -> vector<8x64xf32>
    %120 = vector.extract_strided_slice %118 {offsets = [0, 0], sizes = [1, 64], strides = [1, 1]} : vector<8x64xf32> to vector<1x64xf32>
    %c0_32 = arith.constant 0 : index
    %c0_33 = arith.constant 0 : index
    %121 = vector.load %arg3[%c0_32, %c0_33] : memref<2x64xf32, #tpu.memory_space<vmem>>, vector<1x64xf32>
    tpu.vector_store %arg3[%c0_32, %c0_33], %120 {strides = array<i32>} : memref<2x64xf32, #tpu.memory_space<vmem>>, vector<1x64xf32>,
    %122 = vector.extract_strided_slice %119 {offsets = [1, 0], sizes = [1, 64], strides = [1, 1]} : vector<8x64xf32> to vector<1x64xf32>
    %c1_34 = arith.constant 1 : index
    %c0_35 = arith.constant 0 : index
    %123 = vector.load %arg3[%c1_34, %c0_35] : memref<2x64xf32, #tpu.memory_space<vmem>>, vector<1x64xf32>
    tpu.vector_store %arg3[%c1_34, %c0_35], %122 {strides = array<i32>} : memref<2x64xf32, #tpu.memory_space<vmem>>, vector<1x64xf32>,
    return
  }
  func.func @transform_0(%arg0: i32) -> (i32, i32) {
    %c0_i32 = arith.constant 0 : i32
    %c0_i32_0 = arith.constant 0 : i32
    return %arg0, %c0_i32 : i32, i32
  }
  func.func @transform_1(%arg0: i32) -> (i32, i32) {
    %c0_i32 = arith.constant 0 : i32
    %c0_i32_0 = arith.constant 0 : i32
    %c0_i32_1 = arith.constant 0 : i32
    return %c0_i32, %c0_i32_0 : i32, i32
  }
  func.func @transform_2(%arg0: i32) -> (i32, i32) {
    %c0_i32 = arith.constant 0 : i32
    %c0_i32_0 = arith.constant 0 : i32
    return %c0_i32, %arg0 : i32, i32
  }
}

</mosaic_0001>

<llo_original>
// kernel: tpu_custom_call.1
$region0: #{tpu_custom_call.1}
  #allocation0 [shape = 'u32[]', space=smem, size = 0x4, offset = 0x4, fixed_abs, tag = 'smem constant byte address 0x4 - core index']
  #allocation1 [shape = 'u32[144,128]{1,0:T(1,128)}', space=vmem, size = 0x12000, scoped, tag = 'internal scratch']
  %s0 = inlined_call_operand.vmem [shape: f32[64,2], index: 0, kind: input, shape index: {}]
  %s1 = inlined_call_operand.vmem [shape: f32[24,128], index: 1, kind: input, shape index: {}]
  %s2 = inlined_call_operand.hbm [shape: f32[2,64], index: 2, kind: output, shape index: {}]
  %s3 = sld [smem:[#allocation0]]
  $region18: #{tpu_custom_call.1} parent=0
    _
  %s5 = ssub.s32 1, %s3
  %s6 = scalar_select 0, %s5, %s3
  $region1: #{tpu_custom_call.1} parent=0
    #allocation2 [shape = 'u8[1024]{0}', space=vmem, size = 0x400, scoped, tag = 'output window, operand 0, single buffered']
    #allocation3 [shape = 's32[1]{0}', space=sflag, size = 0x4, scoped, tag = 'scoped memory for tpu_custom_call.1']
    %7 = vsyncpa [#allocation3], 0
    // Predicated region
    $region2: #{tpu_custom_call.1} parent=1 // pred_check
      _
    $region3: #{tpu_custom_call.1} parent=1 // pred_check_branch
      %9 = sbr.rel (0) target = $region5
    $region4: #{tpu_custom_call.1} parent=1 // pred_region
      _
    $region5: #{tpu_custom_call.1} parent=1 // pred_fallthru
      _
    // Predicated region
    $region6: #{tpu_custom_call.1} parent=1 // pred_check
      _
    $region7: #{tpu_custom_call.1} parent=1 // pred_check_branch
      %11 = sbr.rel (0) target = $region9
    $region8: #{tpu_custom_call.1} parent=1 // pred_region
      _
    $region9: #{tpu_custom_call.1} parent=1 // pred_fallthru
      _
    %v12 = vld [vmem:[%s1] sm:$0x1]
    %v13 = vld [vmem:[%s1 + $0x1] sm:$0x1]
    %v14 = vld [vmem:[%s1 + $0x2] sm:$0x1]
    %v15 = vld [vmem:[%s1 + $0x3] sm:$0x1]
    %v16 = vld [vmem:[%s1 + $0x4] sm:$0x1]
    %v17 = vld [vmem:[%s1 + $0x5] sm:$0x1]
    %v18 = vld [vmem:[%s1 + $0x6] sm:$0x1]
    %v19 = vld [vmem:[%s1 + $0x7] sm:$0x1]
    %v20 = vld [vmem:[%s1 + $0x8] sm:$0x1]
    %v21 = vld [vmem:[%s1 + $0x9] sm:$0x1]
    %v22 = vld [vmem:[%s1 + $0xa] sm:$0x1]
    %v23 = vld [vmem:[%s1 + $0xb] sm:$0x1]
    %v24 = vld [vmem:[%s1 + $0xc] sm:$0x1]
    %v25 = vld [vmem:[%s1 + $0x10] sm:$0xff]
    %v26 = vld [vmem:[%s0] sm:$0xff]
    %v27 = vld [vmem:[%s0 + $0x8] sm:$0xff]
    %v28 = vld [vmem:[%s0 + $0x10] sm:$0xff]
    %v29 = vld [vmem:[%s0 + $0x18] sm:$0xff]
    %v30 = vld [vmem:[%s0 + $0x20] sm:$0xff]
    %v31 = vld [vmem:[%s0 + $0x28] sm:$0xff]
    %v32 = vld [vmem:[%s0 + $0x30] sm:$0xff]
    %v33 = vld [vmem:[%s0 + $0x38] sm:$0xff]
    %35 = vset.pattern.permute.xlu0 0
    %36 = vperm.xlu0 %35, %v26
    %v37 = vpop.permute.xlu0 %36
    %40 = vset.pattern.permute.xlu0 0
    %41 = vperm.xlu0 %40, %v27
    %v42 = vpop.permute.xlu0 %41
    %45 = vset.pattern.permute.xlu0 0
    %46 = vperm.xlu0 %45, %v28
    %v47 = vpop.permute.xlu0 %46
    %50 = vset.pattern.permute.xlu0 0
    %51 = vperm.xlu0 %50, %v29
    %v52 = vpop.permute.xlu0 %51
    %55 = vset.pattern.permute.xlu0 0
    %56 = vperm.xlu0 %55, %v30
    %v57 = vpop.permute.xlu0 %56
    %60 = vset.pattern.permute.xlu0 0
    %61 = vperm.xlu0 %60, %v31
    %v62 = vpop.permute.xlu0 %61
    %65 = vset.pattern.permute.xlu0 0
    %66 = vperm.xlu0 %65, %v32
    %v67 = vpop.permute.xlu0 %66
    %70 = vset.pattern.permute.xlu0 0
    %71 = vperm.xlu0 %70, %v33
    %v72 = vpop.permute.xlu0 %71
    %74 = vset.pattern.permute.xlu0 1
    %75 = vperm.xlu0 %74, %v26
    %v76 = vpop.permute.xlu0 %75
    %78 = vset.pattern.permute.xlu0 1
    %79 = vperm.xlu0 %78, %v27
    %v80 = vpop.permute.xlu0 %79
    %82 = vset.pattern.permute.xlu0 1
    %83 = vperm.xlu0 %82, %v28
    %v84 = vpop.permute.xlu0 %83
    %86 = vset.pattern.permute.xlu0 1
    %87 = vperm.xlu0 %86, %v29
    %v88 = vpop.permute.xlu0 %87
    %90 = vset.pattern.permute.xlu0 1
    %91 = vperm.xlu0 %90, %v30
    %v92 = vpop.permute.xlu0 %91
    %94 = vset.pattern.permute.xlu0 1
    %95 = vperm.xlu0 %94, %v31
    %v96 = vpop.permute.xlu0 %95
    %98 = vset.pattern.permute.xlu0 1
    %99 = vperm.xlu0 %98, %v32
    %v100 = vpop.permute.xlu0 %99
    %102 = vset.pattern.permute.xlu0 1
    %103 = vperm.xlu0 %102, %v33
    %v104 = vpop.permute.xlu0 %103
    %v106 = vmul.f32 %v26, 100.0
    %v107 = vmul.f32 %v27, 100.0
    %v108 = vmul.f32 %v28, 100.0
    %v109 = vmul.f32 %v29, 100.0
    %v110 = vmul.f32 %v30, 100.0
    %v111 = vmul.f32 %v31, 100.0
    %v112 = vmul.f32 %v32, 100.0
    %v113 = vmul.f32 %v33, 100.0
    %v114 = vadd.f32 %v106, 0.5
    %v115 = vadd.f32 %v107, 0.5
    %v116 = vadd.f32 %v108, 0.5
    %v117 = vadd.f32 %v109, 0.5
    %v118 = vadd.f32 %v110, 0.5
    %v119 = vadd.f32 %v111, 0.5
    %v120 = vadd.f32 %v112, 0.5
    %v121 = vadd.f32 %v113, 0.5
    %v122 = vfloor.f32 %v114
    %v123 = vfloor.f32 %v115
    %v124 = vfloor.f32 %v116
    %v125 = vfloor.f32 %v117
    %v126 = vfloor.f32 %v118
    %v127 = vfloor.f32 %v119
    %v128 = vfloor.f32 %v120
    %v129 = vfloor.f32 %v121
    %v130 = vmul.f32 %v122, 0.01
    %v131 = vmul.f32 %v123, 0.01
    %v132 = vmul.f32 %v124, 0.01
    %v133 = vmul.f32 %v125, 0.01
    %v134 = vmul.f32 %v126, 0.01
    %v135 = vmul.f32 %v127, 0.01
    %v136 = vmul.f32 %v128, 0.01
    %v137 = vmul.f32 %v129, 0.01
    %139 = vset.pattern.permute.xlu0 0
    %140 = vperm.xlu0 %139, %v130
    %v141 = vpop.permute.xlu0 %140
    %144 = vset.pattern.permute.xlu0 0
    %145 = vperm.xlu0 %144, %v131
    %v146 = vpop.permute.xlu0 %145
    %149 = vset.pattern.permute.xlu0 0
    %150 = vperm.xlu0 %149, %v132
    %v151 = vpop.permute.xlu0 %150
    %154 = vset.pattern.permute.xlu0 0
    %155 = vperm.xlu0 %154, %v133
    %v156 = vpop.permute.xlu0 %155
    %159 = vset.pattern.permute.xlu0 0
    %160 = vperm.xlu0 %159, %v134
    %v161 = vpop.permute.xlu0 %160
    %164 = vset.pattern.permute.xlu0 0
    %165 = vperm.xlu0 %164, %v135
    %v166 = vpop.permute.xlu0 %165
    %169 = vset.pattern.permute.xlu0 0
    %170 = vperm.xlu0 %169, %v136
    %v171 = vpop.permute.xlu0 %170
    %174 = vset.pattern.permute.xlu0 0
    %175 = vperm.xlu0 %174, %v137
    %v176 = vpop.permute.xlu0 %175
    %v178 = vlaneseq
    %v179 = vshrl.u32 %v178, 7
    %v180 = vsub.s32 0, %v179
    %v181 = vrot.slane %v18, %v180
    %v182 = vsub.f32 %v141, %v181
    %v183 = vsub.f32 %v146, %v181
    %v184 = vsub.f32 %v151, %v181
    %v185 = vsub.f32 %v156, %v181
    %v186 = vsub.f32 %v161, %v181
    %v187 = vsub.f32 %v166, %v181
    %v188 = vsub.f32 %v171, %v181
    %v189 = vsub.f32 %v176, %v181
    %v190 = vand.u32 2147483647, %v182
    %v191 = vand.u32 2147483647, %v183
    %v192 = vand.u32 2147483647, %v184
    %v193 = vand.u32 2147483647, %v185
    %v194 = vand.u32 2147483647, %v186
    %v195 = vand.u32 2147483647, %v187
    %v196 = vand.u32 2147483647, %v188
    %v197 = vand.u32 2147483647, %v189
    %vm198 = vcmp.lt.f32.partialorder %v190, 1e-06
    %vm199 = vcmp.lt.f32.partialorder %v191, 1e-06
    %vm200 = vcmp.lt.f32.partialorder %v192, 1e-06
    %vm201 = vcmp.lt.f32.partialorder %v193, 1e-06
    %vm202 = vcmp.lt.f32.partialorder %v194, 1e-06
    %vm203 = vcmp.lt.f32.partialorder %v195, 1e-06
    %vm204 = vcmp.lt.f32.partialorder %v196, 1e-06
    %vm205 = vcmp.lt.f32.partialorder %v197, 1e-06
    %v206 = vlaneseq
    %v207 = vshrl.u32 %v206, 7
    %v208 = vsub.s32 0, %v207
    %v209 = vrot.slane %v19, %v208
    %v210 = vmul.f32 %v209, %v76
    %v211 = vmul.f32 %v209, %v80
    %v212 = vmul.f32 %v209, %v84
    %v213 = vmul.f32 %v209, %v88
    %v214 = vmul.f32 %v209, %v92
    %v215 = vmul.f32 %v209, %v96
    %v216 = vmul.f32 %v209, %v100
    %v217 = vmul.f32 %v209, %v104
    %v218 = vlaneseq
    %v219 = vshrl.u32 %v218, 7
    %v220 = vsub.s32 0, %v219
    %v221 = vrot.slane %v20, %v220
    %v222 = vadd.f32 %v210, %v221
    %v223 = vadd.f32 %v211, %v221
    %v224 = vadd.f32 %v212, %v221
    %v225 = vadd.f32 %v213, %v221
    %v226 = vadd.f32 %v214, %v221
    %v227 = vadd.f32 %v215, %v221
    %v228 = vadd.f32 %v216, %v221
    %v229 = vadd.f32 %v217, %v221
    %v230 = vsel %vm198, %v222, 0.0
    %v231 = vsel %vm199, %v223, 0.0
    %v232 = vsel %vm200, %v224, 0.0
    %v233 = vsel %vm201, %v225, 0.0
    %v234 = vsel %vm202, %v226, 0.0
    %v235 = vsel %vm203, %v227, 0.0
    %v236 = vsel %vm204, %v228, 0.0
    %v237 = vsel %vm205, %v229, 0.0
    %238 = vadd.xlane.f32.xlu0 %v230
    %v239 = vpop.xlane.xlu0 %238
    %240 = vadd.xlane.f32.xlu0 %v231
    %v241 = vpop.xlane.xlu0 %240
    %242 = vadd.xlane.f32.xlu0 %v232
    %v243 = vpop.xlane.xlu0 %242
    %244 = vadd.xlane.f32.xlu0 %v233
    %v245 = vpop.xlane.xlu0 %244
    %246 = vadd.xlane.f32.xlu0 %v234
    %v247 = vpop.xlane.xlu0 %246
    %248 = vadd.xlane.f32.xlu0 %v235
    %v249 = vpop.xlane.xlu0 %248
    %250 = vadd.xlane.f32.xlu0 %v236
    %v251 = vpop.xlane.xlu0 %250
    %252 = vadd.xlane.f32.xlu0 %v237
    %v253 = vpop.xlane.xlu0 %252
    %v254 = vlaneseq
    %v255 = vshrl.u32 %v254, 7
    %v256 = vsub.s32 0, %v255
    %v257 = vrot.slane %v12, %v256
    %v258 = vmul.f32 %v37, %v257
    %v259 = vmul.f32 %v42, %v257
    %v260 = vmul.f32 %v47, %v257
    %v261 = vmul.f32 %v52, %v257
    %v262 = vmul.f32 %v57, %v257
    %v263 = vmul.f32 %v62, %v257
    %v264 = vmul.f32 %v67, %v257
    %v265 = vmul.f32 %v72, %v257
    %v266 = vlaneseq
    %v267 = vshrl.u32 %v266, 7
    %v268 = vsub.s32 0, %v267
    %v269 = vrot.slane %v13, %v268
    %v270 = vmul.f32 %v76, %v269
    %v271 = vmul.f32 %v80, %v269
    %v272 = vmul.f32 %v84, %v269
    %v273 = vmul.f32 %v88, %v269
    %v274 = vmul.f32 %v92, %v269
    %v275 = vmul.f32 %v96, %v269
    %v276 = vmul.f32 %v100, %v269
    %v277 = vmul.f32 %v104, %v269
    %v278 = vadd.f32 %v258, %v270
    %v279 = vadd.f32 %v259, %v271
    %v280 = vadd.f32 %v260, %v272
    %v281 = vadd.f32 %v261, %v273
    %v282 = vadd.f32 %v262, %v274
    %v283 = vadd.f32 %v263, %v275
    %v284 = vadd.f32 %v264, %v276
    %v285 = vadd.f32 %v265, %v277
    %v286 = vlaneseq
    %v287 = vshrl.u32 %v286, 7
    %v288 = vsub.s32 0, %v287
    %v289 = vrot.slane %v16, %v288
    %v290 = vadd.f32 %v278, %v289
    %v291 = vadd.f32 %v279, %v289
    %v292 = vadd.f32 %v280, %v289
    %v293 = vadd.f32 %v281, %v289
    %v294 = vadd.f32 %v282, %v289
    %v295 = vadd.f32 %v283, %v289
    %v296 = vadd.f32 %v284, %v289
    %v297 = vadd.f32 %v285, %v289
    %v298 = vlaneseq
    %v299 = vshrl.u32 %v298, 7
    %v300 = vsub.s32 0, %v299
    %v301 = vrot.slane %v14, %v300
    %v302 = vmul.f32 %v37, %v301
    %v303 = vmul.f32 %v42, %v301
    %v304 = vmul.f32 %v47, %v301
    %v305 = vmul.f32 %v52, %v301
    %v306 = vmul.f32 %v57, %v301
    %v307 = vmul.f32 %v62, %v301
    %v308 = vmul.f32 %v67, %v301
    %v309 = vmul.f32 %v72, %v301
    %v310 = vlaneseq
    %v311 = vshrl.u32 %v310, 7
    %v312 = vsub.s32 0, %v311
    %v313 = vrot.slane %v15, %v312
    %v314 = vmul.f32 %v76, %v313
    %v315 = vmul.f32 %v80, %v313
    %v316 = vmul.f32 %v84, %v313
    %v317 = vmul.f32 %v88, %v313
    %v318 = vmul.f32 %v92, %v313
    %v319 = vmul.f32 %v96, %v313
    %v320 = vmul.f32 %v100, %v313
    %v321 = vmul.f32 %v104, %v313
    %v322 = vadd.f32 %v302, %v314
    %v323 = vadd.f32 %v303, %v315
    %v324 = vadd.f32 %v304, %v316
    %v325 = vadd.f32 %v305, %v317
    %v326 = vadd.f32 %v306, %v318
    %v327 = vadd.f32 %v307, %v319
    %v328 = vadd.f32 %v308, %v320
    %v329 = vadd.f32 %v309, %v321
    %v330 = vlaneseq
    %v331 = vshrl.u32 %v330, 7
    %v332 = vsub.s32 0, %v331
    %v333 = vrot.slane %v17, %v332
    %v334 = vadd.f32 %v322, %v333
    %v335 = vadd.f32 %v323, %v333
    %v336 = vadd.f32 %v324, %v333
    %v337 = vadd.f32 %v325, %v333
    %v338 = vadd.f32 %v326, %v333
    %v339 = vadd.f32 %v327, %v333
    %v340 = vadd.f32 %v328, %v333
    %v341 = vadd.f32 %v329, %v333
    %v342 = vtanh.pop %v290
    %v343 = vtanh.pop %v291
    %v344 = vtanh.pop %v292
    %v345 = vtanh.pop %v293
    %v346 = vtanh.pop %v294
    %v347 = vtanh.pop %v295
    %v348 = vtanh.pop %v296
    %v349 = vtanh.pop %v297
    %v350 = vmul.f32 %v334, 0.5
    %v351 = vmul.f32 %v335, 0.5
    %v352 = vmul.f32 %v336, 0.5
    %v353 = vmul.f32 %v337, 0.5
    %v354 = vmul.f32 %v338, 0.5
    %v355 = vmul.f32 %v339, 0.5
    %v356 = vmul.f32 %v340, 0.5
    %v357 = vmul.f32 %v341, 0.5
    %v358 = vtanh.pop %v350
    %v359 = vtanh.pop %v351
    %v360 = vtanh.pop %v352
    %v361 = vtanh.pop %v353
    %v362 = vtanh.pop %v354
    %v363 = vtanh.pop %v355
    %v364 = vtanh.pop %v356
    %v365 = vtanh.pop %v357
    %v366 = vmul.f32 %v358, 0.5
    %v367 = vmul.f32 %v359, 0.5
    %v368 = vmul.f32 %v360, 0.5
    %v369 = vmul.f32 %v361, 0.5
    %v370 = vmul.f32 %v362, 0.5
    %v371 = vmul.f32 %v363, 0.5
    %v372 = vmul.f32 %v364, 0.5
    %v373 = vmul.f32 %v365, 0.5
    %v374 = vadd.f32 %v366, 0.5
    %v375 = vadd.f32 %v367, 0.5
    %v376 = vadd.f32 %v368, 0.5
    %v377 = vadd.f32 %v369, 0.5
    %v378 = vadd.f32 %v370, 0.5
    %v379 = vadd.f32 %v371, 0.5
    %v380 = vadd.f32 %v372, 0.5
    %v381 = vadd.f32 %v373, 0.5
    %v382 = vmul.f32 %v342, %v374
    %v383 = vmul.f32 %v343, %v375
    %v384 = vmul.f32 %v344, %v376
    %v385 = vmul.f32 %v345, %v377
    %v386 = vmul.f32 %v346, %v378
    %v387 = vmul.f32 %v347, %v379
    %v388 = vmul.f32 %v348, %v380
    %v389 = vmul.f32 %v349, %v381
    %v390 = vmul.f32 %v342, %v342
    %v391 = vmul.f32 %v343, %v343
    %v392 = vmul.f32 %v344, %v344
    %v393 = vmul.f32 %v345, %v345
    %v394 = vmul.f32 %v346, %v346
    %v395 = vmul.f32 %v347, %v347
    %v396 = vmul.f32 %v348, %v348
    %v397 = vmul.f32 %v349, %v349
    %v398 = vsub.f32 1.0, %v390
    %v399 = vsub.f32 1.0, %v391
    %v400 = vsub.f32 1.0, %v392
    %v401 = vsub.f32 1.0, %v393
    %v402 = vsub.f32 1.0, %v394
    %v403 = vsub.f32 1.0, %v395
    %v404 = vsub.f32 1.0, %v396
    %v405 = vsub.f32 1.0, %v397
    %v406 = vmul.f32 %v374, %v374
    %v407 = vmul.f32 %v375, %v375
    %v408 = vmul.f32 %v376, %v376
    %v409 = vmul.f32 %v377, %v377
    %v410 = vmul.f32 %v378, %v378
    %v411 = vmul.f32 %v379, %v379
    %v412 = vmul.f32 %v380, %v380
    %v413 = vmul.f32 %v381, %v381
    %v414 = vsub.f32 %v374, %v406
    %v415 = vsub.f32 %v375, %v407
    %v416 = vsub.f32 %v376, %v408
    %v417 = vsub.f32 %v377, %v409
    %v418 = vsub.f32 %v378, %v410
    %v419 = vsub.f32 %v379, %v411
    %v420 = vsub.f32 %v380, %v412
    %v421 = vsub.f32 %v381, %v413
    %v422 = vmul.f32 %v398, %v374
    %v423 = vmul.f32 %v399, %v375
    %v424 = vmul.f32 %v400, %v376
    %v425 = vmul.f32 %v401, %v377
    %v426 = vmul.f32 %v402, %v378
    %v427 = vmul.f32 %v403, %v379
    %v428 = vmul.f32 %v404, %v380
    %v429 = vmul.f32 %v405, %v381
    %v430 = vmul.f32 %v342, %v414
    %v431 = vmul.f32 %v343, %v415
    %v432 = vmul.f32 %v344, %v416
    %v433 = vmul.f32 %v345, %v417
    %v434 = vmul.f32 %v346, %v418
    %v435 = vmul.f32 %v347, %v419
    %v436 = vmul.f32 %v348, %v420
    %v437 = vmul.f32 %v349, %v421
    %v438 = vmul.f32 %v422, %v257
    %v439 = vmul.f32 %v423, %v257
    %v440 = vmul.f32 %v424, %v257
    %v441 = vmul.f32 %v425, %v257
    %v442 = vmul.f32 %v426, %v257
    %v443 = vmul.f32 %v427, %v257
    %v444 = vmul.f32 %v428, %v257
    %v445 = vmul.f32 %v429, %v257
    %v446 = vmul.f32 %v430, %v301
    %v447 = vmul.f32 %v431, %v301
    %v448 = vmul.f32 %v432, %v301
    %v449 = vmul.f32 %v433, %v301
    %v450 = vmul.f32 %v434, %v301
    %v451 = vmul.f32 %v435, %v301
    %v452 = vmul.f32 %v436, %v301
    %v453 = vmul.f32 %v437, %v301
    %v454 = vadd.f32 %v438, %v446
    %v455 = vadd.f32 %v439, %v447
    %v456 = vadd.f32 %v440, %v448
    %v457 = vadd.f32 %v441, %v449
    %v458 = vadd.f32 %v442, %v450
    %v459 = vadd.f32 %v443, %v451
    %v460 = vadd.f32 %v444, %v452
    %v461 = vadd.f32 %v445, %v453
    %v462 = vmul.f32 %v422, %v269
    %v463 = vmul.f32 %v423, %v269
    %v464 = vmul.f32 %v424, %v269
    %v465 = vmul.f32 %v425, %v269
    %v466 = vmul.f32 %v426, %v269
    %v467 = vmul.f32 %v427, %v269
    %v468 = vmul.f32 %v428, %v269
    %v469 = vmul.f32 %v429, %v269
    %v470 = vmul.f32 %v430, %v313
    %v471 = vmul.f32 %v431, %v313
    %v472 = vmul.f32 %v432, %v313
    %v473 = vmul.f32 %v433, %v313
    %v474 = vmul.f32 %v434, %v313
    %v475 = vmul.f32 %v435, %v313
    %v476 = vmul.f32 %v436, %v313
    %v477 = vmul.f32 %v437, %v313
    %v478 = vadd.f32 %v462, %v470
    %v479 = vadd.f32 %v463, %v471
    %v480 = vadd.f32 %v464, %v472
    %v481 = vadd.f32 %v465, %v473
    %v482 = vadd.f32 %v466, %v474
    %v483 = vadd.f32 %v467, %v475
    %v484 = vadd.f32 %v468, %v476
    %v485 = vadd.f32 %v469, %v477
    %v486 = vmul.f32 %v342, %v422
    %v487 = vmul.f32 %v343, %v423
    %v488 = vmul.f32 %v344, %v424
    %v489 = vmul.f32 %v345, %v425
    %v490 = vmul.f32 %v346, %v426
    %v491 = vmul.f32 %v347, %v427
    %v492 = vmul.f32 %v348, %v428
    %v493 = vmul.f32 %v349, %v429
    %v494 = vmul.f32 %v398, %v414
    %v495 = vmul.f32 %v399, %v415
    %v496 = vmul.f32 %v400, %v416
    %v497 = vmul.f32 %v401, %v417
    %v498 = vmul.f32 %v402, %v418
    %v499 = vmul.f32 %v403, %v419
    %v500 = vmul.f32 %v404, %v420
    %v501 = vmul.f32 %v405, %v421
    %v502 = vmul.f32 %v430, %v374
    %v503 = vmul.f32 %v431, %v375
    %v504 = vmul.f32 %v432, %v376
    %v505 = vmul.f32 %v433, %v377
    %v506 = vmul.f32 %v434, %v378
    %v507 = vmul.f32 %v435, %v379
    %v508 = vmul.f32 %v436, %v380
    %v509 = vmul.f32 %v437, %v381
    %v510 = vmul.f32 %v502, 2.0
    %v511 = vmul.f32 %v503, 2.0
    %v512 = vmul.f32 %v504, 2.0
    %v513 = vmul.f32 %v505, 2.0
    %v514 = vmul.f32 %v506, 2.0
    %v515 = vmul.f32 %v507, 2.0
    %v516 = vmul.f32 %v508, 2.0
    %v517 = vmul.f32 %v509, 2.0
    %v518 = vsub.f32 %v430, %v510
    %v519 = vsub.f32 %v431, %v511
    %v520 = vsub.f32 %v432, %v512
    %v521 = vsub.f32 %v433, %v513
    %v522 = vsub.f32 %v434, %v514
    %v523 = vsub.f32 %v435, %v515
    %v524 = vsub.f32 %v436, %v516
    %v525 = vsub.f32 %v437, %v517
    %v526 = vmul.f32 %v26, 0.5
    %v527 = vmul.f32 %v27, 0.5
    %v528 = vmul.f32 %v28, 0.5
    %v529 = vmul.f32 %v29, 0.5
    %v530 = vmul.f32 %v30, 0.5
    %v531 = vmul.f32 %v31, 0.5
    %v532 = vmul.f32 %v32, 0.5
    %v533 = vmul.f32 %v33, 0.5
    %v534 = vmul.f32 %v239, 0.5
    %v535 = vmul.f32 %v241, 0.5
    %v536 = vmul.f32 %v243, 0.5
    %v537 = vmul.f32 %v245, 0.5
    %v538 = vmul.f32 %v247, 0.5
    %v539 = vmul.f32 %v249, 0.5
    %v540 = vmul.f32 %v251, 0.5
    %v541 = vmul.f32 %v253, 0.5
    %v542 = vadd.f32 %v526, %v534
    %v543 = vadd.f32 %v527, %v535
    %v544 = vadd.f32 %v528, %v536
    %v545 = vadd.f32 %v529, %v537
    %v546 = vadd.f32 %v530, %v538
    %v547 = vadd.f32 %v531, %v539
    %v548 = vadd.f32 %v532, %v540
    %v549 = vadd.f32 %v533, %v541
    %v550 = vmul.f32 %v26, %v26
    %v551 = vmul.f32 %v27, %v27
    %v552 = vmul.f32 %v28, %v28
    %v553 = vmul.f32 %v29, %v29
    %v554 = vmul.f32 %v30, %v30
    %v555 = vmul.f32 %v31, %v31
    %v556 = vmul.f32 %v32, %v32
    %v557 = vmul.f32 %v33, %v33
    %v558 = vmul.f32 %v550, 0.5
    %v559 = vmul.f32 %v551, 0.5
    %v560 = vmul.f32 %v552, 0.5
    %v561 = vmul.f32 %v553, 0.5
    %v562 = vmul.f32 %v554, 0.5
    %v563 = vmul.f32 %v555, 0.5
    %v564 = vmul.f32 %v556, 0.5
    %v565 = vmul.f32 %v557, 0.5
    %v566 = vmul.f32 %v239, %v239
    %v567 = vmul.f32 %v241, %v241
    %v568 = vmul.f32 %v243, %v243
    %v569 = vmul.f32 %v245, %v245
    %v570 = vmul.f32 %v247, %v247
    %v571 = vmul.f32 %v249, %v249
    %v572 = vmul.f32 %v251, %v251
    %v573 = vmul.f32 %v253, %v253
    %v574 = vmul.f32 %v566, 0.9
    %v575 = vmul.f32 %v567, 0.9
    %v576 = vmul.f32 %v568, 0.9
    %v577 = vmul.f32 %v569, 0.9
    %v578 = vmul.f32 %v570, 0.9
    %v579 = vmul.f32 %v571, 0.9
    %v580 = vmul.f32 %v572, 0.9
    %v581 = vmul.f32 %v573, 0.9
    %v582 = vadd.f32 %v558, %v574
    %v583 = vadd.f32 %v559, %v575
    %v584 = vadd.f32 %v560, %v576
    %v585 = vadd.f32 %v561, %v577
    %v586 = vadd.f32 %v562, %v578
    %v587 = vadd.f32 %v563, %v579
    %v588 = vadd.f32 %v564, %v580
    %v589 = vadd.f32 %v565, %v581
    %v590 = vlaneseq
    %v591 = vshrl.u32 %v590, 7
    %v592 = vsub.s32 0, %v591
    %v593 = vrot.slane %v24, %v592
    %v594 = vadd.f32 %v382, %v593
    %v595 = vadd.f32 %v383, %v593
    %v596 = vadd.f32 %v384, %v593
    %v597 = vadd.f32 %v385, %v593
    %v598 = vadd.f32 %v386, %v593
    %v599 = vadd.f32 %v387, %v593
    %v600 = vadd.f32 %v388, %v593
    %v601 = vadd.f32 %v389, %v593
    %603 = vset.pattern.permute.xlu0 1
    %604 = vperm.xlu0 %603, %v542
    %v605 = vpop.permute.xlu0 %604
    %608 = vset.pattern.permute.xlu0 1
    %609 = vperm.xlu0 %608, %v543
    %v610 = vpop.permute.xlu0 %609
    %613 = vset.pattern.permute.xlu0 1
    %614 = vperm.xlu0 %613, %v544
    %v615 = vpop.permute.xlu0 %614
    %618 = vset.pattern.permute.xlu0 1
    %619 = vperm.xlu0 %618, %v545
    %v620 = vpop.permute.xlu0 %619
    %623 = vset.pattern.permute.xlu0 1
    %624 = vperm.xlu0 %623, %v546
    %v625 = vpop.permute.xlu0 %624
    %628 = vset.pattern.permute.xlu0 1
    %629 = vperm.xlu0 %628, %v547
    %v630 = vpop.permute.xlu0 %629
    %633 = vset.pattern.permute.xlu0 1
    %634 = vperm.xlu0 %633, %v548
    %v635 = vpop.permute.xlu0 %634
    %638 = vset.pattern.permute.xlu0 1
    %639 = vperm.xlu0 %638, %v549
    %v640 = vpop.permute.xlu0 %639
    %v642 = vmul.f32 %v605, %v478
    %v643 = vmul.f32 %v610, %v479
    %v644 = vmul.f32 %v615, %v480
    %v645 = vmul.f32 %v620, %v481
    %v646 = vmul.f32 %v625, %v482
    %v647 = vmul.f32 %v630, %v483
    %v648 = vmul.f32 %v635, %v484
    %v649 = vmul.f32 %v640, %v485
    %v650 = vadd.f32 %v454, %v642
    %v651 = vadd.f32 %v455, %v643
    %v652 = vadd.f32 %v456, %v644
    %v653 = vadd.f32 %v457, %v645
    %v654 = vadd.f32 %v458, %v646
    %v655 = vadd.f32 %v459, %v647
    %v656 = vadd.f32 %v460, %v648
    %v657 = vadd.f32 %v461, %v649
    %v658 = vlaneseq
    %v659 = vshrl.u32 %v658, 7
    %v660 = vsub.s32 0, %v659
    %v661 = vrot.slane %v21, %v660
    %v662 = vmul.f32 %v486, %v661
    %v663 = vmul.f32 %v487, %v661
    %v664 = vmul.f32 %v488, %v661
    %v665 = vmul.f32 %v489, %v661
    %v666 = vmul.f32 %v490, %v661
    %v667 = vmul.f32 %v491, %v661
    %v668 = vmul.f32 %v492, %v661
    %v669 = vmul.f32 %v493, %v661
    %v670 = vadd.f32 %v650, %v662
    %v671 = vadd.f32 %v651, %v663
    %v672 = vadd.f32 %v652, %v664
    %v673 = vadd.f32 %v653, %v665
    %v674 = vadd.f32 %v654, %v666
    %v675 = vadd.f32 %v655, %v667
    %v676 = vadd.f32 %v656, %v668
    %v677 = vadd.f32 %v657, %v669
    %v678 = vlaneseq
    %v679 = vshrl.u32 %v678, 7
    %v680 = vsub.s32 0, %v679
    %v681 = vrot.slane %v22, %v680
    %v682 = vmul.f32 %v494, %v681
    %v683 = vmul.f32 %v495, %v681
    %v684 = vmul.f32 %v496, %v681
    %v685 = vmul.f32 %v497, %v681
    %v686 = vmul.f32 %v498, %v681
    %v687 = vmul.f32 %v499, %v681
    %v688 = vmul.f32 %v500, %v681
    %v689 = vmul.f32 %v501, %v681
    %v690 = vadd.f32 %v670, %v682
    %v691 = vadd.f32 %v671, %v683
    %v692 = vadd.f32 %v672, %v684
    %v693 = vadd.f32 %v673, %v685
    %v694 = vadd.f32 %v674, %v686
    %v695 = vadd.f32 %v675, %v687
    %v696 = vadd.f32 %v676, %v688
    %v697 = vadd.f32 %v677, %v689
    %v698 = vlaneseq
    %v699 = vshrl.u32 %v698, 7
    %v700 = vsub.s32 0, %v699
    %v701 = vrot.slane %v23, %v700
    %v702 = vmul.f32 %v518, %v701
    %v703 = vmul.f32 %v519, %v701
    %v704 = vmul.f32 %v520, %v701
    %v705 = vmul.f32 %v521, %v701
    %v706 = vmul.f32 %v522, %v701
    %v707 = vmul.f32 %v523, %v701
    %v708 = vmul.f32 %v524, %v701
    %v709 = vmul.f32 %v525, %v701
    %v710 = vadd.f32 %v690, %v702
    %v711 = vadd.f32 %v691, %v703
    %v712 = vadd.f32 %v692, %v704
    %v713 = vadd.f32 %v693, %v705
    %v714 = vadd.f32 %v694, %v706
    %v715 = vadd.f32 %v695, %v707
    %v716 = vadd.f32 %v696, %v708
    %v717 = vadd.f32 %v697, %v709
    %719 = vset.pattern.permute.xlu0 1
    %720 = vperm.xlu0 %719, %v582
    %v721 = vpop.permute.xlu0 %720
    %724 = vset.pattern.permute.xlu0 1
    %725 = vperm.xlu0 %724, %v583
    %v726 = vpop.permute.xlu0 %725
    %729 = vset.pattern.permute.xlu0 1
    %730 = vperm.xlu0 %729, %v584
    %v731 = vpop.permute.xlu0 %730
    %734 = vset.pattern.permute.xlu0 1
    %735 = vperm.xlu0 %734, %v585
    %v736 = vpop.permute.xlu0 %735
    %739 = vset.pattern.permute.xlu0 1
    %740 = vperm.xlu0 %739, %v586
    %v741 = vpop.permute.xlu0 %740
    %744 = vset.pattern.permute.xlu0 1
    %745 = vperm.xlu0 %744, %v587
    %v746 = vpop.permute.xlu0 %745
    %749 = vset.pattern.permute.xlu0 1
    %750 = vperm.xlu0 %749, %v588
    %v751 = vpop.permute.xlu0 %750
    %754 = vset.pattern.permute.xlu0 1
    %755 = vperm.xlu0 %754, %v589
    %v756 = vpop.permute.xlu0 %755
    %v758 = vmul.f32 %v721, %v593
    %v759 = vmul.f32 %v726, %v593
    %v760 = vmul.f32 %v731, %v593
    %v761 = vmul.f32 %v736, %v593
    %v762 = vmul.f32 %v741, %v593
    %v763 = vmul.f32 %v746, %v593
    %v764 = vmul.f32 %v751, %v593
    %v765 = vmul.f32 %v756, %v593
    %v766 = vadd.f32 %v710, %v758
    %v767 = vadd.f32 %v711, %v759
    %v768 = vadd.f32 %v712, %v760
    %v769 = vadd.f32 %v713, %v761
    %v770 = vadd.f32 %v714, %v762
    %v771 = vadd.f32 %v715, %v763
    %v772 = vadd.f32 %v716, %v764
    %v773 = vadd.f32 %v717, %v765
    %774 = vmatprep.subr.mxu0 0.0
    %v775 = vand.u32 %v594, 4294901760
    %776 = vmatpush1.xpose.msra.mxu0 %v775
    %777 = vmatprep.subr.mxu0 0.0
    %v778 = vand.u32 %v595, 4294901760
    %779 = vmatpush1.xpose.msra.mxu0 %v778
    %780 = vmatprep.subr.mxu0 0.0
    %v781 = vand.u32 %v596, 4294901760
    %782 = vmatpush1.xpose.msra.mxu0 %v781
    %783 = vmatprep.subr.mxu0 0.0
    %v784 = vand.u32 %v597, 4294901760
    %785 = vmatpush1.xpose.msra.mxu0 %v784
    %786 = vmatprep.subr.mxu0 0.0
    %v787 = vand.u32 %v598, 4294901760
    %788 = vmatpush1.xpose.msra.mxu0 %v787
    %789 = vmatprep.subr.mxu0 0.0
    %v790 = vand.u32 %v599, 4294901760
    %791 = vmatpush1.xpose.msra.mxu0 %v790
    %792 = vmatprep.subr.mxu0 0.0
    %v793 = vand.u32 %v600, 4294901760
    %794 = vmatpush1.xpose.msra.mxu0 %v793
    %795 = vmatprep.subr.mxu0 0.0
    %v796 = vand.u32 %v601, 4294901760
    %797 = vmatpush1.xpose.msra.mxu0 %v796
    %798 = vmatprep.subr.mxu0 0.0
    %799 = vmatpush1.xpose.msra.mxu0 0.0
    %800 = vmatprep.subr.mxu0 0.0
    %801 = vmatpush1.xpose.msra.mxu0 0.0
    %802 = vmatprep.subr.mxu0 0.0
    %803 = vmatpush1.xpose.msra.mxu0 0.0
    %804 = vmatprep.subr.mxu0 0.0
    %805 = vmatpush1.xpose.msra.mxu0 0.0
    %806 = vmatprep.subr.mxu0 0.0
    %807 = vmatpush1.xpose.msra.mxu0 0.0
    %808 = vmatprep.subr.mxu0 0.0
    %809 = vmatpush1.xpose.msra.mxu0 0.0
    %810 = vmatprep.subr.mxu0 0.0
    %811 = vmatpush1.xpose.msra.mxu0 0.0
    %812 = vmatprep.subr.mxu0 0.0
    %813 = vmatpush1.xpose.msra.mxu0 0.0
    %814 = vmatprep.subr.mxu0 0.0
    %815 = vmatpush1.xpose.msra.mxu0 0.0
    %816 = vmatprep.subr.mxu0 0.0
    %817 = vmatpush1.xpose.msra.mxu0 0.0
    %818 = vmatprep.subr.mxu0 0.0
    %819 = vmatpush1.xpose.msra.mxu0 0.0
    %820 = vmatprep.subr.mxu0 0.0
    %821 = vmatpush1.xpose.msra.mxu0 0.0
    %822 = vmatprep.subr.mxu0 0.0
    %823 = vmatpush1.xpose.msra.mxu0 0.0
    %824 = vmatprep.subr.mxu0 0.0
    %825 = vmatpush1.xpose.msra.mxu0 0.0
    %826 = vmatprep.subr.mxu0 0.0
    %827 = vmatpush1.xpose.msra.mxu0 0.0
    %828 = vmatprep.subr.mxu0 0.0
    %829 = vmatpush1.xpose.msra.mxu0 0.0
    %830 = vmatprep.subr.mxu0 0.0
    %831 = vmatpush1.xpose.msra.mxu0 0.0
    %832 = vmatprep.subr.mxu0 0.0
    %833 = vmatpush1.xpose.msra.mxu0 0.0
    %834 = vmatprep.subr.mxu0 0.0
    %835 = vmatpush1.xpose.msra.mxu0 0.0
    %836 = vmatprep.subr.mxu0 0.0
    %837 = vmatpush1.xpose.msra.mxu0 0.0
    %838 = vmatprep.subr.mxu0 0.0
    %839 = vmatpush1.xpose.msra.mxu0 0.0
    %840 = vmatprep.subr.mxu0 0.0
    %841 = vmatpush1.xpose.msra.mxu0 0.0
    %842 = vmatprep.subr.mxu0 0.0
    %843 = vmatpush1.xpose.msra.mxu0 0.0
    %844 = vmatprep.subr.mxu0 0.0
    %845 = vmatpush1.xpose.msra.mxu0 0.0
    %846 = vmatprep.mubr.f32.mxu0 0.0
    %v847 = vand.u32 %v25, 4294901760
    %v848 = vsub.f32 %v25, %v847
    %v849 = vand.u32 %v848, 4294901760
    %v850 = vsub.f32 %v848, %v849
    %v851 = vand.u32 %v850, 4294901760
    %852 = vmatmul.mubr.f32.gmra.mrb[0].mxu0 %v851
    %v853 = vpop.f32.mrb[0].mxu0
    %v854 = vadd.f32 0.0, %v853
    %v855 = vpop.f32.mrb[0].mxu0
    %856 = vdwg.mxu0
    %857 = vmatprep.subr.mxu0 0.0
    %v858 = vand.u32 %v594, 4294901760
    %v859 = vsub.f32 %v594, %v858
    %v860 = vand.u32 %v859, 4294901760
    %v861 = vsub.f32 %v859, %v860
    %v862 = vand.u32 %v861, 4294901760
    %863 = vmatpush1.xpose.msra.mxu0 %v862
    %864 = vmatprep.subr.mxu0 0.0
    %v865 = vand.u32 %v595, 4294901760
    %v866 = vsub.f32 %v595, %v865
    %v867 = vand.u32 %v866, 4294901760
    %v868 = vsub.f32 %v866, %v867
    %v869 = vand.u32 %v868, 4294901760
    %870 = vmatpush1.xpose.msra.mxu0 %v869
    %871 = vmatprep.subr.mxu0 0.0
    %v872 = vand.u32 %v596, 4294901760
    %v873 = vsub.f32 %v596, %v872
    %v874 = vand.u32 %v873, 4294901760
    %v875 = vsub.f32 %v873, %v874
    %v876 = vand.u32 %v875, 4294901760
    %877 = vmatpush1.xpose.msra.mxu0 %v876
    %878 = vmatprep.subr.mxu0 0.0
    %v879 = vand.u32 %v597, 4294901760
    %v880 = vsub.f32 %v597, %v879
    %v881 = vand.u32 %v880, 4294901760
    %v882 = vsub.f32 %v880, %v881
    %v883 = vand.u32 %v882, 4294901760
    %884 = vmatpush1.xpose.msra.mxu0 %v883
    %885 = vmatprep.subr.mxu0 0.0
    %v886 = vand.u32 %v598, 4294901760
    %v887 = vsub.f32 %v598, %v886
    %v888 = vand.u32 %v887, 4294901760
    %v889 = vsub.f32 %v887, %v888
    %v890 = vand.u32 %v889, 4294901760
    %891 = vmatpush1.xpose.msra.mxu0 %v890
    %892 = vmatprep.subr.mxu0 0.0
    %v893 = vand.u32 %v599, 4294901760
    %v894 = vsub.f32 %v599, %v893
    %v895 = vand.u32 %v894, 4294901760
    %v896 = vsub.f32 %v894, %v895
    %v897 = vand.u32 %v896, 4294901760
    %898 = vmatpush1.xpose.msra.mxu0 %v897
    %899 = vmatprep.subr.mxu0 0.0
    %v900 = vand.u32 %v600, 4294901760
    %v901 = vsub.f32 %v600, %v900
    %v902 = vand.u32 %v901, 4294901760
    %v903 = vsub.f32 %v901, %v902
    %v904 = vand.u32 %v903, 4294901760
    %905 = vmatpush1.xpose.msra.mxu0 %v904
    %906 = vmatprep.subr.mxu0 0.0
    %v907 = vand.u32 %v601, 4294901760
    %v908 = vsub.f32 %v601, %v907
    %v909 = vand.u32 %v908, 4294901760
    %v910 = vsub.f32 %v908, %v909
    %v911 = vand.u32 %v910, 4294901760
    %912 = vmatpush1.xpose.msra.mxu0 %v911
    %913 = vmatprep.subr.mxu0 0.0
    %914 = vmatpush1.xpose.msra.mxu0 0.0
    %915 = vmatprep.subr.mxu0 0.0
    %916 = vmatpush1.xpose.msra.mxu0 0.0
    %917 = vmatprep.subr.mxu0 0.0
    %918 = vmatpush1.xpose.msra.mxu0 0.0
    %919 = vmatprep.subr.mxu0 0.0
    %920 = vmatpush1.xpose.msra.mxu0 0.0
    %921 = vmatprep.subr.mxu0 0.0
    %922 = vmatpush1.xpose.msra.mxu0 0.0
    %923 = vmatprep.subr.mxu0 0.0
    %924 = vmatpush1.xpose.msra.mxu0 0.0
    %925 = vmatprep.subr.mxu0 0.0
    %926 = vmatpush1.xpose.msra.mxu0 0.0
    %927 = vmatprep.subr.mxu0 0.0
    %928 = vmatpush1.xpose.msra.mxu0 0.0
    %929 = vmatprep.subr.mxu0 0.0
    %930 = vmatpush1.xpose.msra.mxu0 0.0
    %931 = vmatprep.subr.mxu0 0.0
    %932 = vmatpush1.xpose.msra.mxu0 0.0
    %933 = vmatprep.subr.mxu0 0.0
    %934 = vmatpush1.xpose.msra.mxu0 0.0
    %935 = vmatprep.subr.mxu0 0.0
    %936 = vmatpush1.xpose.msra.mxu0 0.0
    %937 = vmatprep.subr.mxu0 0.0
    %938 = vmatpush1.xpose.msra.mxu0 0.0
    %939 = vmatprep.subr.mxu0 0.0
    %940 = vmatpush1.xpose.msra.mxu0 0.0
    %941 = vmatprep.subr.mxu0 0.0
    %942 = vmatpush1.xpose.msra.mxu0 0.0
    %943 = vmatprep.subr.mxu0 0.0
    %944 = vmatpush1.xpose.msra.mxu0 0.0
    %945 = vmatprep.subr.mxu0 0.0
    %946 = vmatpush1.xpose.msra.mxu0 0.0
    %947 = vmatprep.subr.mxu0 0.0
    %948 = vmatpush1.xpose.msra.mxu0 0.0
    %949 = vmatprep.subr.mxu0 0.0
    %950 = vmatpush1.xpose.msra.mxu0 0.0
    %951 = vmatprep.subr.mxu0 0.0
    %952 = vmatpush1.xpose.msra.mxu0 0.0
    %953 = vmatprep.subr.mxu0 0.0
    %954 = vmatpush1.xpose.msra.mxu0 0.0
    %955 = vmatprep.subr.mxu0 0.0
    %956 = vmatpush1.xpose.msra.mxu0 0.0
    %957 = vmatprep.subr.mxu0 0.0
    %958 = vmatpush1.xpose.msra.mxu0 0.0
    %959 = vmatprep.subr.mxu0 0.0
    %960 = vmatpush1.xpose.msra.mxu0 0.0
    %961 = vmatprep.mubr.f32.mxu0 0.0
    %v962 = vand.u32 %v25, 4294901760
    %963 = vmatmul.mubr.f32.gmra.mrb[0].mxu0 %v962
    %v964 = vpop.f32.mrb[0].mxu0
    %v965 = vadd.f32 %v854, %v964
    %v966 = vpop.f32.mrb[0].mxu0
    %967 = vdwg.mxu0
    %968 = vmatprep.subr.mxu0 0.0
    %v969 = vand.u32 %v594, 4294901760
    %v970 = vsub.f32 %v594, %v969
    %971 = vmatpush1.xpose.msra.mxu0 %v970
    %972 = vmatprep.subr.mxu0 0.0
    %v973 = vand.u32 %v595, 4294901760
    %v974 = vsub.f32 %v595, %v973
    %975 = vmatpush1.xpose.msra.mxu0 %v974
    %976 = vmatprep.subr.mxu0 0.0
    %v977 = vand.u32 %v596, 4294901760
    %v978 = vsub.f32 %v596, %v977
    %979 = vmatpush1.xpose.msra.mxu0 %v978
    %980 = vmatprep.subr.mxu0 0.0
    %v981 = vand.u32 %v597, 4294901760
    %v982 = vsub.f32 %v597, %v981
    %983 = vmatpush1.xpose.msra.mxu0 %v982
    %984 = vmatprep.subr.mxu0 0.0
    %v985 = vand.u32 %v598, 4294901760
    %v986 = vsub.f32 %v598, %v985
    %987 = vmatpush1.xpose.msra.mxu0 %v986
    %988 = vmatprep.subr.mxu0 0.0
    %v989 = vand.u32 %v599, 4294901760
    %v990 = vsub.f32 %v599, %v989
    %991 = vmatpush1.xpose.msra.mxu0 %v990
    %992 = vmatprep.subr.mxu0 0.0
    %v993 = vand.u32 %v600, 4294901760
    %v994 = vsub.f32 %v600, %v993
    %995 = vmatpush1.xpose.msra.mxu0 %v994
    %996 = vmatprep.subr.mxu0 0.0
    %v997 = vand.u32 %v601, 4294901760
    %v998 = vsub.f32 %v601, %v997
    %999 = vmatpush1.xpose.msra.mxu0 %v998
    %1000 = vmatprep.subr.mxu0 0.0
    %1001 = vmatpush1.xpose.msra.mxu0 0.0
    %1002 = vmatprep.subr.mxu0 0.0
    %1003 = vmatpush1.xpose.msra.mxu0 0.0
    %1004 = vmatprep.subr.mxu0 0.0
    %1005 = vmatpush1.xpose.msra.mxu0 0.0
    %1006 = vmatprep.subr.mxu0 0.0
    %1007 = vmatpush1.xpose.msra.mxu0 0.0
    %1008 = vmatprep.subr.mxu0 0.0
    %1009 = vmatpush1.xpose.msra.mxu0 0.0
    %1010 = vmatprep.subr.mxu0 0.0
    %1011 = vmatpush1.xpose.msra.mxu0 0.0
    %1012 = vmatprep.subr.mxu0 0.0
    %1013 = vmatpush1.xpose.msra.mxu0 0.0
    %1014 = vmatprep.subr.mxu0 0.0
    %1015 = vmatpush1.xpose.msra.mxu0 0.0
    %1016 = vmatprep.subr.mxu0 0.0
    %1017 = vmatpush1.xpose.msra.mxu0 0.0
    %1018 = vmatprep.subr.mxu0 0.0
    %1019 = vmatpush1.xpose.msra.mxu0 0.0
    %1020 = vmatprep.subr.mxu0 0.0
    %1021 = vmatpush1.xpose.msra.mxu0 0.0
    %1022 = vmatprep.subr.mxu0 0.0
    %1023 = vmatpush1.xpose.msra.mxu0 0.0
    %1024 = vmatprep.subr.mxu0 0.0
    %1025 = vmatpush1.xpose.msra.mxu0 0.0
    %1026 = vmatprep.subr.mxu0 0.0
    %1027 = vmatpush1.xpose.msra.mxu0 0.0
    %1028 = vmatprep.subr.mxu0 0.0
    %1029 = vmatpush1.xpose.msra.mxu0 0.0
    %1030 = vmatprep.subr.mxu0 0.0
    %1031 = vmatpush1.xpose.msra.mxu0 0.0
    %1032 = vmatprep.subr.mxu0 0.0
    %1033 = vmatpush1.xpose.msra.mxu0 0.0
    %1034 = vmatprep.subr.mxu0 0.0
    %1035 = vmatpush1.xpose.msra.mxu0 0.0
    %1036 = vmatprep.subr.mxu0 0.0
    %1037 = vmatpush1.xpose.msra.mxu0 0.0
    %1038 = vmatprep.subr.mxu0 0.0
    %1039 = vmatpush1.xpose.msra.mxu0 0.0
    %1040 = vmatprep.subr.mxu0 0.0
    %1041 = vmatpush1.xpose.msra.mxu0 0.0
    %1042 = vmatprep.subr.mxu0 0.0
    %1043 = vmatpush1.xpose.msra.mxu0 0.0
    %1044 = vmatprep.subr.mxu0 0.0
    %1045 = vmatpush1.xpose.msra.mxu0 0.0
    %1046 = vmatprep.subr.mxu0 0.0
    %1047 = vmatpush1.xpose.msra.mxu0 0.0
    %1048 = vmatprep.mubr.f32.mxu0 0.0
    %v1049 = vand.u32 %v25, 4294901760
    %v1050 = vsub.f32 %v25, %v1049
    %1051 = vmatmul.mubr.f32.gmra.mrb[0].mxu0 %v1050
    %v1052 = vpop.f32.mrb[0].mxu0
    %v1053 = vadd.f32 %v965, %v1052
    %v1054 = vpop.f32.mrb[0].mxu0
    %1055 = vdwg.mxu0
    %1056 = vmatprep.subr.mxu0 0.0
    %v1057 = vand.u32 %v594, 4294901760
    %1058 = vmatpush1.xpose.msra.mxu0 %v1057
    %1059 = vmatprep.subr.mxu0 0.0
    %v1060 = vand.u32 %v595, 4294901760
    %1061 = vmatpush1.xpose.msra.mxu0 %v1060
    %1062 = vmatprep.subr.mxu0 0.0
    %v1063 = vand.u32 %v596, 4294901760
    %1064 = vmatpush1.xpose.msra.mxu0 %v1063
    %1065 = vmatprep.subr.mxu0 0.0
    %v1066 = vand.u32 %v597, 4294901760
    %1067 = vmatpush1.xpose.msra.mxu0 %v1066
    %1068 = vmatprep.subr.mxu0 0.0
    %v1069 = vand.u32 %v598, 4294901760
    %1070 = vmatpush1.xpose.msra.mxu0 %v1069
    %1071 = vmatprep.subr.mxu0 0.0
    %v1072 = vand.u32 %v599, 4294901760
    %1073 = vmatpush1.xpose.msra.mxu0 %v1072
    %1074 = vmatprep.subr.mxu0 0.0
    %v1075 = vand.u32 %v600, 4294901760
    %1076 = vmatpush1.xpose.msra.mxu0 %v1075
    %1077 = vmatprep.subr.mxu0 0.0
    %v1078 = vand.u32 %v601, 4294901760
    %1079 = vmatpush1.xpose.msra.mxu0 %v1078
    %1080 = vmatprep.subr.mxu0 0.0
    %1081 = vmatpush1.xpose.msra.mxu0 0.0
    %1082 = vmatprep.subr.mxu0 0.0
    %1083 = vmatpush1.xpose.msra.mxu0 0.0
    %1084 = vmatprep.subr.mxu0 0.0
    %1085 = vmatpush1.xpose.msra.mxu0 0.0
    %1086 = vmatprep.subr.mxu0 0.0
    %1087 = vmatpush1.xpose.msra.mxu0 0.0
    %1088 = vmatprep.subr.mxu0 0.0
    %1089 = vmatpush1.xpose.msra.mxu0 0.0
    %1090 = vmatprep.subr.mxu0 0.0
    %1091 = vmatpush1.xpose.msra.mxu0 0.0
    %1092 = vmatprep.subr.mxu0 0.0
    %1093 = vmatpush1.xpose.msra.mxu0 0.0
    %1094 = vmatprep.subr.mxu0 0.0
    %1095 = vmatpush1.xpose.msra.mxu0 0.0
    %1096 = vmatprep.subr.mxu0 0.0
    %1097 = vmatpush1.xpose.msra.mxu0 0.0
    %1098 = vmatprep.subr.mxu0 0.0
    %1099 = vmatpush1.xpose.msra.mxu0 0.0
    %1100 = vmatprep.subr.mxu0 0.0
    %1101 = vmatpush1.xpose.msra.mxu0 0.0
    %1102 = vmatprep.subr.mxu0 0.0
    %1103 = vmatpush1.xpose.msra.mxu0 0.0
    %1104 = vmatprep.subr.mxu0 0.0
    %1105 = vmatpush1.xpose.msra.mxu0 0.0
    %1106 = vmatprep.subr.mxu0 0.0
    %1107 = vmatpush1.xpose.msra.mxu0 0.0
    %1108 = vmatprep.subr.mxu0 0.0
    %1109 = vmatpush1.xpose.msra.mxu0 0.0
    %1110 = vmatprep.subr.mxu0 0.0
    %1111 = vmatpush1.xpose.msra.mxu0 0.0
    %1112 = vmatprep.subr.mxu0 0.0
    %1113 = vmatpush1.xpose.msra.mxu0 0.0
    %1114 = vmatprep.subr.mxu0 0.0
    %1115 = vmatpush1.xpose.msra.mxu0 0.0
    %1116 = vmatprep.subr.mxu0 0.0
    %1117 = vmatpush1.xpose.msra.mxu0 0.0
    %1118 = vmatprep.subr.mxu0 0.0
    %1119 = vmatpush1.xpose.msra.mxu0 0.0
    %1120 = vmatprep.subr.mxu0 0.0
    %1121 = vmatpush1.xpose.msra.mxu0 0.0
    %1122 = vmatprep.subr.mxu0 0.0
    %1123 = vmatpush1.xpose.msra.mxu0 0.0
    %1124 = vmatprep.subr.mxu0 0.0
    %1125 = vmatpush1.xpose.msra.mxu0 0.0
    %1126 = vmatprep.subr.mxu0 0.0
    %1127 = vmatpush1.xpose.msra.mxu0 0.0
    %1128 = vmatprep.mubr.f32.mxu0 0.0
    %v1129 = vand.u32 %v25, 4294901760
    %v1130 = vsub.f32 %v25, %v1129
    %v1131 = vand.u32 %v1130, 4294901760
    %1132 = vmatmul.mubr.f32.gmra.mrb[0].mxu0 %v1131
    %v1133 = vpop.f32.mrb[0].mxu0
    %v1134 = vadd.f32 %v1053, %v1133
    %v1135 = vpop.f32.mrb[0].mxu0
    %1136 = vdwg.mxu0
    %1137 = vmatprep.subr.mxu0 0.0
    %v1138 = vand.u32 %v594, 4294901760
    %v1139 = vsub.f32 %v594, %v1138
    %v1140 = vand.u32 %v1139, 4294901760
    %1141 = vmatpush1.xpose.msra.mxu0 %v1140
    %1142 = vmatprep.subr.mxu0 0.0
    %v1143 = vand.u32 %v595, 4294901760
    %v1144 = vsub.f32 %v595, %v1143
    %v1145 = vand.u32 %v1144, 4294901760
    %1146 = vmatpush1.xpose.msra.mxu0 %v1145
    %1147 = vmatprep.subr.mxu0 0.0
    %v1148 = vand.u32 %v596, 4294901760
    %v1149 = vsub.f32 %v596, %v1148
    %v1150 = vand.u32 %v1149, 4294901760
    %1151 = vmatpush1.xpose.msra.mxu0 %v1150
    %1152 = vmatprep.subr.mxu0 0.0
    %v1153 = vand.u32 %v597, 4294901760
    %v1154 = vsub.f32 %v597, %v1153
    %v1155 = vand.u32 %v1154, 4294901760
    %1156 = vmatpush1.xpose.msra.mxu0 %v1155
    %1157 = vmatprep.subr.mxu0 0.0
    %v1158 = vand.u32 %v598, 4294901760
    %v1159 = vsub.f32 %v598, %v1158
    %v1160 = vand.u32 %v1159, 4294901760
    %1161 = vmatpush1.xpose.msra.mxu0 %v1160
    %1162 = vmatprep.subr.mxu0 0.0
    %v1163 = vand.u32 %v599, 4294901760
    %v1164 = vsub.f32 %v599, %v1163
    %v1165 = vand.u32 %v1164, 4294901760
    %1166 = vmatpush1.xpose.msra.mxu0 %v1165
    %1167 = vmatprep.subr.mxu0 0.0
    %v1168 = vand.u32 %v600, 4294901760
    %v1169 = vsub.f32 %v600, %v1168
    %v1170 = vand.u32 %v1169, 4294901760
    %1171 = vmatpush1.xpose.msra.mxu0 %v1170
    %1172 = vmatprep.subr.mxu0 0.0
    %v1173 = vand.u32 %v601, 4294901760
    %v1174 = vsub.f32 %v601, %v1173
    %v1175 = vand.u32 %v1174, 4294901760
    %1176 = vmatpush1.xpose.msra.mxu0 %v1175
    %1177 = vmatprep.subr.mxu0 0.0
    %1178 = vmatpush1.xpose.msra.mxu0 0.0
    %1179 = vmatprep.subr.mxu0 0.0
    %1180 = vmatpush1.xpose.msra.mxu0 0.0
    %1181 = vmatprep.subr.mxu0 0.0
    %1182 = vmatpush1.xpose.msra.mxu0 0.0
    %1183 = vmatprep.subr.mxu0 0.0
    %1184 = vmatpush1.xpose.msra.mxu0 0.0
    %1185 = vmatprep.subr.mxu0 0.0
    %1186 = vmatpush1.xpose.msra.mxu0 0.0
    %1187 = vmatprep.subr.mxu0 0.0
    %1188 = vmatpush1.xpose.msra.mxu0 0.0
    %1189 = vmatprep.subr.mxu0 0.0
    %1190 = vmatpush1.xpose.msra.mxu0 0.0
    %1191 = vmatprep.subr.mxu0 0.0
    %1192 = vmatpush1.xpose.msra.mxu0 0.0
    %1193 = vmatprep.subr.mxu0 0.0
    %1194 = vmatpush1.xpose.msra.mxu0 0.0
    %1195 = vmatprep.subr.mxu0 0.0
    %1196 = vmatpush1.xpose.msra.mxu0 0.0
    %1197 = vmatprep.subr.mxu0 0.0
    %1198 = vmatpush1.xpose.msra.mxu0 0.0
    %1199 = vmatprep.subr.mxu0 0.0
    %1200 = vmatpush1.xpose.msra.mxu0 0.0
    %1201 = vmatprep.subr.mxu0 0.0
    %1202 = vmatpush1.xpose.msra.mxu0 0.0
    %1203 = vmatprep.subr.mxu0 0.0
    %1204 = vmatpush1.xpose.msra.mxu0 0.0
    %1205 = vmatprep.subr.mxu0 0.0
    %1206 = vmatpush1.xpose.msra.mxu0 0.0
    %1207 = vmatprep.subr.mxu0 0.0
    %1208 = vmatpush1.xpose.msra.mxu0 0.0
    %1209 = vmatprep.subr.mxu0 0.0
    %1210 = vmatpush1.xpose.msra.mxu0 0.0
    %1211 = vmatprep.subr.mxu0 0.0
    %1212 = vmatpush1.xpose.msra.mxu0 0.0
    %1213 = vmatprep.subr.mxu0 0.0
    %1214 = vmatpush1.xpose.msra.mxu0 0.0
    %1215 = vmatprep.subr.mxu0 0.0
    %1216 = vmatpush1.xpose.msra.mxu0 0.0
    %1217 = vmatprep.subr.mxu0 0.0
    %1218 = vmatpush1.xpose.msra.mxu0 0.0
    %1219 = vmatprep.subr.mxu0 0.0
    %1220 = vmatpush1.xpose.msra.mxu0 0.0
    %1221 = vmatprep.subr.mxu0 0.0
    %1222 = vmatpush1.xpose.msra.mxu0 0.0
    %1223 = vmatprep.subr.mxu0 0.0
    %1224 = vmatpush1.xpose.msra.mxu0 0.0
    %1225 = vmatprep.mubr.f32.mxu0 0.0
    %v1226 = vand.u32 %v25, 4294901760
    %1227 = vmatmul.mubr.f32.gmra.mrb[0].mxu0 %v1226
    %v1228 = vpop.f32.mrb[0].mxu0
    %v1229 = vadd.f32 %v1134, %v1228
    %v1230 = vpop.f32.mrb[0].mxu0
    %1231 = vdwg.mxu0
    %1232 = vmatprep.subr.mxu0 0.0
    %v1233 = vand.u32 %v594, 4294901760
    %1234 = vmatpush1.xpose.msra.mxu0 %v1233
    %1235 = vmatprep.subr.mxu0 0.0
    %v1236 = vand.u32 %v595, 4294901760
    %1237 = vmatpush1.xpose.msra.mxu0 %v1236
    %1238 = vmatprep.subr.mxu0 0.0
    %v1239 = vand.u32 %v596, 4294901760
    %1240 = vmatpush1.xpose.msra.mxu0 %v1239
    %1241 = vmatprep.subr.mxu0 0.0
    %v1242 = vand.u32 %v597, 4294901760
    %1243 = vmatpush1.xpose.msra.mxu0 %v1242
    %1244 = vmatprep.subr.mxu0 0.0
    %v1245 = vand.u32 %v598, 4294901760
    %1246 = vmatpush1.xpose.msra.mxu0 %v1245
    %1247 = vmatprep.subr.mxu0 0.0
    %v1248 = vand.u32 %v599, 4294901760
    %1249 = vmatpush1.xpose.msra.mxu0 %v1248
    %1250 = vmatprep.subr.mxu0 0.0
    %v1251 = vand.u32 %v600, 4294901760
    %1252 = vmatpush1.xpose.msra.mxu0 %v1251
    %1253 = vmatprep.subr.mxu0 0.0
    %v1254 = vand.u32 %v601, 4294901760
    %1255 = vmatpush1.xpose.msra.mxu0 %v1254
    %1256 = vmatprep.subr.mxu0 0.0
    %1257 = vmatpush1.xpose.msra.mxu0 0.0
    %1258 = vmatprep.subr.mxu0 0.0
    %1259 = vmatpush1.xpose.msra.mxu0 0.0
    %1260 = vmatprep.subr.mxu0 0.0
    %1261 = vmatpush1.xpose.msra.mxu0 0.0
    %1262 = vmatprep.subr.mxu0 0.0
    %1263 = vmatpush1.xpose.msra.mxu0 0.0
    %1264 = vmatprep.subr.mxu0 0.0
    %1265 = vmatpush1.xpose.msra.mxu0 0.0
    %1266 = vmatprep.subr.mxu0 0.0
    %1267 = vmatpush1.xpose.msra.mxu0 0.0
    %1268 = vmatprep.subr.mxu0 0.0
    %1269 = vmatpush1.xpose.msra.mxu0 0.0
    %1270 = vmatprep.subr.mxu0 0.0
    %1271 = vmatpush1.xpose.msra.mxu0 0.0
    %1272 = vmatprep.subr.mxu0 0.0
    %1273 = vmatpush1.xpose.msra.mxu0 0.0
    %1274 = vmatprep.subr.mxu0 0.0
    %1275 = vmatpush1.xpose.msra.mxu0 0.0
    %1276 = vmatprep.subr.mxu0 0.0
    %1277 = vmatpush1.xpose.msra.mxu0 0.0
    %1278 = vmatprep.subr.mxu0 0.0
    %1279 = vmatpush1.xpose.msra.mxu0 0.0
    %1280 = vmatprep.subr.mxu0 0.0
    %1281 = vmatpush1.xpose.msra.mxu0 0.0
    %1282 = vmatprep.subr.mxu0 0.0
    %1283 = vmatpush1.xpose.msra.mxu0 0.0
    %1284 = vmatprep.subr.mxu0 0.0
    %1285 = vmatpush1.xpose.msra.mxu0 0.0
    %1286 = vmatprep.subr.mxu0 0.0
    %1287 = vmatpush1.xpose.msra.mxu0 0.0
    %1288 = vmatprep.subr.mxu0 0.0
    %1289 = vmatpush1.xpose.msra.mxu0 0.0
    %1290 = vmatprep.subr.mxu0 0.0
    %1291 = vmatpush1.xpose.msra.mxu0 0.0
    %1292 = vmatprep.subr.mxu0 0.0
    %1293 = vmatpush1.xpose.msra.mxu0 0.0
    %1294 = vmatprep.subr.mxu0 0.0
    %1295 = vmatpush1.xpose.msra.mxu0 0.0
    %1296 = vmatprep.subr.mxu0 0.0
    %1297 = vmatpush1.xpose.msra.mxu0 0.0
    %1298 = vmatprep.subr.mxu0 0.0
    %1299 = vmatpush1.xpose.msra.mxu0 0.0
    %1300 = vmatprep.subr.mxu0 0.0
    %1301 = vmatpush1.xpose.msra.mxu0 0.0
    %1302 = vmatprep.subr.mxu0 0.0
    %1303 = vmatpush1.xpose.msra.mxu0 0.0
    %1304 = vmatprep.mubr.f32.mxu0 0.0
    %v1305 = vand.u32 %v25, 4294901760
    %1306 = vmatmul.mubr.f32.gmra.mrb[0].mxu0 %v1305
    %v1307 = vpop.f32.mrb[0].mxu0
    %v1308 = vadd.f32 %v1229, %v1307
    %v1309 = vpop.f32.mrb[0].mxu0
    %1310 = vdwg.mxu0
    %1311 = vmatprep.subr.mxu0 0.0
    %v1312 = vand.u32 %v766, 4294901760
    %1313 = vmatpush1.xpose.msra.mxu0 %v1312
    %1314 = vmatprep.subr.mxu0 0.0
    %v1315 = vand.u32 %v767, 4294901760
    %1316 = vmatpush1.xpose.msra.mxu0 %v1315
    %1317 = vmatprep.subr.mxu0 0.0
    %v1318 = vand.u32 %v768, 4294901760
    %1319 = vmatpush1.xpose.msra.mxu0 %v1318
    %1320 = vmatprep.subr.mxu0 0.0
    %v1321 = vand.u32 %v769, 4294901760
    %1322 = vmatpush1.xpose.msra.mxu0 %v1321
    %1323 = vmatprep.subr.mxu0 0.0
    %v1324 = vand.u32 %v770, 4294901760
    %1325 = vmatpush1.xpose.msra.mxu0 %v1324
    %1326 = vmatprep.subr.mxu0 0.0
    %v1327 = vand.u32 %v771, 4294901760
    %1328 = vmatpush1.xpose.msra.mxu0 %v1327
    %1329 = vmatprep.subr.mxu0 0.0
    %v1330 = vand.u32 %v772, 4294901760
    %1331 = vmatpush1.xpose.msra.mxu0 %v1330
    %1332 = vmatprep.subr.mxu0 0.0
    %v1333 = vand.u32 %v773, 4294901760
    %1334 = vmatpush1.xpose.msra.mxu0 %v1333
    %1335 = vmatprep.subr.mxu0 0.0
    %1336 = vmatpush1.xpose.msra.mxu0 0.0
    %1337 = vmatprep.subr.mxu0 0.0
    %1338 = vmatpush1.xpose.msra.mxu0 0.0
    %1339 = vmatprep.subr.mxu0 0.0
    %1340 = vmatpush1.xpose.msra.mxu0 0.0
    %1341 = vmatprep.subr.mxu0 0.0
    %1342 = vmatpush1.xpose.msra.mxu0 0.0
    %1343 = vmatprep.subr.mxu0 0.0
    %1344 = vmatpush1.xpose.msra.mxu0 0.0
    %1345 = vmatprep.subr.mxu0 0.0
    %1346 = vmatpush1.xpose.msra.mxu0 0.0
    %1347 = vmatprep.subr.mxu0 0.0
    %1348 = vmatpush1.xpose.msra.mxu0 0.0
    %1349 = vmatprep.subr.mxu0 0.0
    %1350 = vmatpush1.xpose.msra.mxu0 0.0
    %1351 = vmatprep.subr.mxu0 0.0
    %1352 = vmatpush1.xpose.msra.mxu0 0.0
    %1353 = vmatprep.subr.mxu0 0.0
    %1354 = vmatpush1.xpose.msra.mxu0 0.0
    %1355 = vmatprep.subr.mxu0 0.0
    %1356 = vmatpush1.xpose.msra.mxu0 0.0
    %1357 = vmatprep.subr.mxu0 0.0
    %1358 = vmatpush1.xpose.msra.mxu0 0.0
    %1359 = vmatprep.subr.mxu0 0.0
    %1360 = vmatpush1.xpose.msra.mxu0 0.0
    %1361 = vmatprep.subr.mxu0 0.0
    %1362 = vmatpush1.xpose.msra.mxu0 0.0
    %1363 = vmatprep.subr.mxu0 0.0
    %1364 = vmatpush1.xpose.msra.mxu0 0.0
    %1365 = vmatprep.subr.mxu0 0.0
    %1366 = vmatpush1.xpose.msra.mxu0 0.0
    %1367 = vmatprep.subr.mxu0 0.0
    %1368 = vmatpush1.xpose.msra.mxu0 0.0
    %1369 = vmatprep.subr.mxu0 0.0
    %1370 = vmatpush1.xpose.msra.mxu0 0.0
    %1371 = vmatprep.subr.mxu0 0.0
    %1372 = vmatpush1.xpose.msra.mxu0 0.0
    %1373 = vmatprep.subr.mxu0 0.0
    %1374 = vmatpush1.xpose.msra.mxu0 0.0
    %1375 = vmatprep.subr.mxu0 0.0
    %1376 = vmatpush1.xpose.msra.mxu0 0.0
    %1377 = vmatprep.subr.mxu0 0.0
    %1378 = vmatpush1.xpose.msra.mxu0 0.0
    %1379 = vmatprep.subr.mxu0 0.0
    %1380 = vmatpush1.xpose.msra.mxu0 0.0
    %1381 = vmatprep.subr.mxu0 0.0
    %1382 = vmatpush1.xpose.msra.mxu0 0.0
    %1383 = vmatprep.mubr.f32.mxu0 0.0
    %v1384 = vand.u32 %v25, 4294901760
    %v1385 = vsub.f32 %v25, %v1384
    %v1386 = vand.u32 %v1385, 4294901760
    %v1387 = vsub.f32 %v1385, %v1386
    %v1388 = vand.u32 %v1387, 4294901760
    %1389 = vmatmul.mubr.f32.gmra.mrb[0].mxu0 %v1388
    %v1390 = vpop.f32.mrb[0].mxu0
    %v1391 = vadd.f32 0.0, %v1390
    %v1392 = vpop.f32.mrb[0].mxu0
    %1393 = vdwg.mxu0
    %1394 = vmatprep.subr.mxu0 0.0
    %v1395 = vand.u32 %v766, 4294901760
    %v1396 = vsub.f32 %v766, %v1395
    %v1397 = vand.u32 %v1396, 4294901760
    %v1398 = vsub.f32 %v1396, %v1397
    %v1399 = vand.u32 %v1398, 4294901760
    %1400 = vmatpush1.xpose.msra.mxu0 %v1399
    %1401 = vmatprep.subr.mxu0 0.0
    %v1402 = vand.u32 %v767, 4294901760
    %v1403 = vsub.f32 %v767, %v1402
    %v1404 = vand.u32 %v1403, 4294901760
    %v1405 = vsub.f32 %v1403, %v1404
    %v1406 = vand.u32 %v1405, 4294901760
    %1407 = vmatpush1.xpose.msra.mxu0 %v1406
    %1408 = vmatprep.subr.mxu0 0.0
    %v1409 = vand.u32 %v768, 4294901760
    %v1410 = vsub.f32 %v768, %v1409
    %v1411 = vand.u32 %v1410, 4294901760
    %v1412 = vsub.f32 %v1410, %v1411
    %v1413 = vand.u32 %v1412, 4294901760
    %1414 = vmatpush1.xpose.msra.mxu0 %v1413
    %1415 = vmatprep.subr.mxu0 0.0
    %v1416 = vand.u32 %v769, 4294901760
    %v1417 = vsub.f32 %v769, %v1416
    %v1418 = vand.u32 %v1417, 4294901760
    %v1419 = vsub.f32 %v1417, %v1418
    %v1420 = vand.u32 %v1419, 4294901760
    %1421 = vmatpush1.xpose.msra.mxu0 %v1420
    %1422 = vmatprep.subr.mxu0 0.0
    %v1423 = vand.u32 %v770, 4294901760
    %v1424 = vsub.f32 %v770, %v1423
    %v1425 = vand.u32 %v1424, 4294901760
    %v1426 = vsub.f32 %v1424, %v1425
    %v1427 = vand.u32 %v1426, 4294901760
    %1428 = vmatpush1.xpose.msra.mxu0 %v1427
    %1429 = vmatprep.subr.mxu0 0.0
    %v1430 = vand.u32 %v771, 4294901760
    %v1431 = vsub.f32 %v771, %v1430
    %v1432 = vand.u32 %v1431, 4294901760
    %v1433 = vsub.f32 %v1431, %v1432
    %v1434 = vand.u32 %v1433, 4294901760
    %1435 = vmatpush1.xpose.msra.mxu0 %v1434
    %1436 = vmatprep.subr.mxu0 0.0
    %v1437 = vand.u32 %v772, 4294901760
    %v1438 = vsub.f32 %v772, %v1437
    %v1439 = vand.u32 %v1438, 4294901760
    %v1440 = vsub.f32 %v1438, %v1439
    %v1441 = vand.u32 %v1440, 4294901760
    %1442 = vmatpush1.xpose.msra.mxu0 %v1441
    %1443 = vmatprep.subr.mxu0 0.0
    %v1444 = vand.u32 %v773, 4294901760
    %v1445 = vsub.f32 %v773, %v1444
    %v1446 = vand.u32 %v1445, 4294901760
    %v1447 = vsub.f32 %v1445, %v1446
    %v1448 = vand.u32 %v1447, 4294901760
    %1449 = vmatpush1.xpose.msra.mxu0 %v1448
    %1450 = vmatprep.subr.mxu0 0.0
    %1451 = vmatpush1.xpose.msra.mxu0 0.0
    %1452 = vmatprep.subr.mxu0 0.0
    %1453 = vmatpush1.xpose.msra.mxu0 0.0
    %1454 = vmatprep.subr.mxu0 0.0
    %1455 = vmatpush1.xpose.msra.mxu0 0.0
    %1456 = vmatprep.subr.mxu0 0.0
    %1457 = vmatpush1.xpose.msra.mxu0 0.0
    %1458 = vmatprep.subr.mxu0 0.0
    %1459 = vmatpush1.xpose.msra.mxu0 0.0
    %1460 = vmatprep.subr.mxu0 0.0
    %1461 = vmatpush1.xpose.msra.mxu0 0.0
    %1462 = vmatprep.subr.mxu0 0.0
    %1463 = vmatpush1.xpose.msra.mxu0 0.0
    %1464 = vmatprep.subr.mxu0 0.0
    %1465 = vmatpush1.xpose.msra.mxu0 0.0
    %1466 = vmatprep.subr.mxu0 0.0
    %1467 = vmatpush1.xpose.msra.mxu0 0.0
    %1468 = vmatprep.subr.mxu0 0.0
    %1469 = vmatpush1.xpose.msra.mxu0 0.0
    %1470 = vmatprep.subr.mxu0 0.0
    %1471 = vmatpush1.xpose.msra.mxu0 0.0
    %1472 = vmatprep.subr.mxu0 0.0
    %1473 = vmatpush1.xpose.msra.mxu0 0.0
    %1474 = vmatprep.subr.mxu0 0.0
    %1475 = vmatpush1.xpose.msra.mxu0 0.0
    %1476 = vmatprep.subr.mxu0 0.0
    %1477 = vmatpush1.xpose.msra.mxu0 0.0
    %1478 = vmatprep.subr.mxu0 0.0
    %1479 = vmatpush1.xpose.msra.mxu0 0.0
    %1480 = vmatprep.subr.mxu0 0.0
    %1481 = vmatpush1.xpose.msra.mxu0 0.0
    %1482 = vmatprep.subr.mxu0 0.0
    %1483 = vmatpush1.xpose.msra.mxu0 0.0
    %1484 = vmatprep.subr.mxu0 0.0
    %1485 = vmatpush1.xpose.msra.mxu0 0.0
    %1486 = vmatprep.subr.mxu0 0.0
    %1487 = vmatpush1.xpose.msra.mxu0 0.0
    %1488 = vmatprep.subr.mxu0 0.0
    %1489 = vmatpush1.xpose.msra.mxu0 0.0
    %1490 = vmatprep.subr.mxu0 0.0
    %1491 = vmatpush1.xpose.msra.mxu0 0.0
    %1492 = vmatprep.subr.mxu0 0.0
    %1493 = vmatpush1.xpose.msra.mxu0 0.0
    %1494 = vmatprep.subr.mxu0 0.0
    %1495 = vmatpush1.xpose.msra.mxu0 0.0
    %1496 = vmatprep.subr.mxu0 0.0
    %1497 = vmatpush1.xpose.msra.mxu0 0.0
    %1498 = vmatprep.mubr.f32.mxu0 0.0
    %v1499 = vand.u32 %v25, 4294901760
    %1500 = vmatmul.mubr.f32.gmra.mrb[0].mxu0 %v1499
    %v1501 = vpop.f32.mrb[0].mxu0
    %v1502 = vadd.f32 %v1391, %v1501
    %v1503 = vpop.f32.mrb[0].mxu0
    %1504 = vdwg.mxu0
    %1505 = vmatprep.subr.mxu0 0.0
    %v1506 = vand.u32 %v766, 4294901760
    %v1507 = vsub.f32 %v766, %v1506
    %1508 = vmatpush1.xpose.msra.mxu0 %v1507
    %1509 = vmatprep.subr.mxu0 0.0
    %v1510 = vand.u32 %v767, 4294901760
    %v1511 = vsub.f32 %v767, %v1510
    %1512 = vmatpush1.xpose.msra.mxu0 %v1511
    %1513 = vmatprep.subr.mxu0 0.0
    %v1514 = vand.u32 %v768, 4294901760
    %v1515 = vsub.f32 %v768, %v1514
    %1516 = vmatpush1.xpose.msra.mxu0 %v1515
    %1517 = vmatprep.subr.mxu0 0.0
    %v1518 = vand.u32 %v769, 4294901760
    %v1519 = vsub.f32 %v769, %v1518
    %1520 = vmatpush1.xpose.msra.mxu0 %v1519
    %1521 = vmatprep.subr.mxu0 0.0
    %v1522 = vand.u32 %v770, 4294901760
    %v1523 = vsub.f32 %v770, %v1522
    %1524 = vmatpush1.xpose.msra.mxu0 %v1523
    %1525 = vmatprep.subr.mxu0 0.0
    %v1526 = vand.u32 %v771, 4294901760
    %v1527 = vsub.f32 %v771, %v1526
    %1528 = vmatpush1.xpose.msra.mxu0 %v1527
    %1529 = vmatprep.subr.mxu0 0.0
    %v1530 = vand.u32 %v772, 4294901760
    %v1531 = vsub.f32 %v772, %v1530
    %1532 = vmatpush1.xpose.msra.mxu0 %v1531
    %1533 = vmatprep.subr.mxu0 0.0
    %v1534 = vand.u32 %v773, 4294901760
    %v1535 = vsub.f32 %v773, %v1534
    %1536 = vmatpush1.xpose.msra.mxu0 %v1535
    %1537 = vmatprep.subr.mxu0 0.0
    %1538 = vmatpush1.xpose.msra.mxu0 0.0
    %1539 = vmatprep.subr.mxu0 0.0
    %1540 = vmatpush1.xpose.msra.mxu0 0.0
    %1541 = vmatprep.subr.mxu0 0.0
    %1542 = vmatpush1.xpose.msra.mxu0 0.0
    %1543 = vmatprep.subr.mxu0 0.0
    %1544 = vmatpush1.xpose.msra.mxu0 0.0
    %1545 = vmatprep.subr.mxu0 0.0
    %1546 = vmatpush1.xpose.msra.mxu0 0.0
    %1547 = vmatprep.subr.mxu0 0.0
    %1548 = vmatpush1.xpose.msra.mxu0 0.0
    %1549 = vmatprep.subr.mxu0 0.0
    %1550 = vmatpush1.xpose.msra.mxu0 0.0
    %1551 = vmatprep.subr.mxu0 0.0
    %1552 = vmatpush1.xpose.msra.mxu0 0.0
    %1553 = vmatprep.subr.mxu0 0.0
    %1554 = vmatpush1.xpose.msra.mxu0 0.0
    %1555 = vmatprep.subr.mxu0 0.0
    %1556 = vmatpush1.xpose.msra.mxu0 0.0
    %1557 = vmatprep.subr.mxu0 0.0
    %1558 = vmatpush1.xpose.msra.mxu0 0.0
    %1559 = vmatprep.subr.mxu0 0.0
    %1560 = vmatpush1.xpose.msra.mxu0 0.0
    %1561 = vmatprep.subr.mxu0 0.0
    %1562 = vmatpush1.xpose.msra.mxu0 0.0
    %1563 = vmatprep.subr.mxu0 0.0
    %1564 = vmatpush1.xpose.msra.mxu0 0.0
    %1565 = vmatprep.subr.mxu0 0.0
    %1566 = vmatpush1.xpose.msra.mxu0 0.0
    %1567 = vmatprep.subr.mxu0 0.0
    %1568 = vmatpush1.xpose.msra.mxu0 0.0
    %1569 = vmatprep.subr.mxu0 0.0
    %1570 = vmatpush1.xpose.msra.mxu0 0.0
    %1571 = vmatprep.subr.mxu0 0.0
    %1572 = vmatpush1.xpose.msra.mxu0 0.0
    %1573 = vmatprep.subr.mxu0 0.0
    %1574 = vmatpush1.xpose.msra.mxu0 0.0
    %1575 = vmatprep.subr.mxu0 0.0
    %1576 = vmatpush1.xpose.msra.mxu0 0.0
    %1577 = vmatprep.subr.mxu0 0.0
    %1578 = vmatpush1.xpose.msra.mxu0 0.0
    %1579 = vmatprep.subr.mxu0 0.0
    %1580 = vmatpush1.xpose.msra.mxu0 0.0
    %1581 = vmatprep.subr.mxu0 0.0
    %1582 = vmatpush1.xpose.msra.mxu0 0.0
    %1583 = vmatprep.subr.mxu0 0.0
    %1584 = vmatpush1.xpose.msra.mxu0 0.0
    %1585 = vmatprep.mubr.f32.mxu0 0.0
    %v1586 = vand.u32 %v25, 4294901760
    %v1587 = vsub.f32 %v25, %v1586
    %1588 = vmatmul.mubr.f32.gmra.mrb[0].mxu0 %v1587
    %v1589 = vpop.f32.mrb[0].mxu0
    %v1590 = vadd.f32 %v1502, %v1589
    %v1591 = vpop.f32.mrb[0].mxu0
    %1592 = vdwg.mxu0
    %1593 = vmatprep.subr.mxu0 0.0
    %v1594 = vand.u32 %v766, 4294901760
    %1595 = vmatpush1.xpose.msra.mxu0 %v1594
    %1596 = vmatprep.subr.mxu0 0.0
    %v1597 = vand.u32 %v767, 4294901760
    %1598 = vmatpush1.xpose.msra.mxu0 %v1597
    %1599 = vmatprep.subr.mxu0 0.0
    %v1600 = vand.u32 %v768, 4294901760
    %1601 = vmatpush1.xpose.msra.mxu0 %v1600
    %1602 = vmatprep.subr.mxu0 0.0
    %v1603 = vand.u32 %v769, 4294901760
    %1604 = vmatpush1.xpose.msra.mxu0 %v1603
    %1605 = vmatprep.subr.mxu0 0.0
    %v1606 = vand.u32 %v770, 4294901760
    %1607 = vmatpush1.xpose.msra.mxu0 %v1606
    %1608 = vmatprep.subr.mxu0 0.0
    %v1609 = vand.u32 %v771, 4294901760
    %1610 = vmatpush1.xpose.msra.mxu0 %v1609
    %1611 = vmatprep.subr.mxu0 0.0
    %v1612 = vand.u32 %v772, 4294901760
    %1613 = vmatpush1.xpose.msra.mxu0 %v1612
    %1614 = vmatprep.subr.mxu0 0.0
    %v1615 = vand.u32 %v773, 4294901760
    %1616 = vmatpush1.xpose.msra.mxu0 %v1615
    %1617 = vmatprep.subr.mxu0 0.0
    %1618 = vmatpush1.xpose.msra.mxu0 0.0
    %1619 = vmatprep.subr.mxu0 0.0
    %1620 = vmatpush1.xpose.msra.mxu0 0.0
    %1621 = vmatprep.subr.mxu0 0.0
    %1622 = vmatpush1.xpose.msra.mxu0 0.0
    %1623 = vmatprep.subr.mxu0 0.0
    %1624 = vmatpush1.xpose.msra.mxu0 0.0
    %1625 = vmatprep.subr.mxu0 0.0
    %1626 = vmatpush1.xpose.msra.mxu0 0.0
    %1627 = vmatprep.subr.mxu0 0.0
    %1628 = vmatpush1.xpose.msra.mxu0 0.0
    %1629 = vmatprep.subr.mxu0 0.0
    %1630 = vmatpush1.xpose.msra.mxu0 0.0
    %1631 = vmatprep.subr.mxu0 0.0
    %1632 = vmatpush1.xpose.msra.mxu0 0.0
    %1633 = vmatprep.subr.mxu0 0.0
    %1634 = vmatpush1.xpose.msra.mxu0 0.0
    %1635 = vmatprep.subr.mxu0 0.0
    %1636 = vmatpush1.xpose.msra.mxu0 0.0
    %1637 = vmatprep.subr.mxu0 0.0
    %1638 = vmatpush1.xpose.msra.mxu0 0.0
    %1639 = vmatprep.subr.mxu0 0.0
    %1640 = vmatpush1.xpose.msra.mxu0 0.0
    %1641 = vmatprep.subr.mxu0 0.0
    %1642 = vmatpush1.xpose.msra.mxu0 0.0
    %1643 = vmatprep.subr.mxu0 0.0
    %1644 = vmatpush1.xpose.msra.mxu0 0.0
    %1645 = vmatprep.subr.mxu0 0.0
    %1646 = vmatpush1.xpose.msra.mxu0 0.0
    %1647 = vmatprep.subr.mxu0 0.0
    %1648 = vmatpush1.xpose.msra.mxu0 0.0
    %1649 = vmatprep.subr.mxu0 0.0
    %1650 = vmatpush1.xpose.msra.mxu0 0.0
    %1651 = vmatprep.subr.mxu0 0.0
    %1652 = vmatpush1.xpose.msra.mxu0 0.0
    %1653 = vmatprep.subr.mxu0 0.0
    %1654 = vmatpush1.xpose.msra.mxu0 0.0
    %1655 = vmatprep.subr.mxu0 0.0
    %1656 = vmatpush1.xpose.msra.mxu0 0.0
    %1657 = vmatprep.subr.mxu0 0.0
    %1658 = vmatpush1.xpose.msra.mxu0 0.0
    %1659 = vmatprep.subr.mxu0 0.0
    %1660 = vmatpush1.xpose.msra.mxu0 0.0
    %1661 = vmatprep.subr.mxu0 0.0
    %1662 = vmatpush1.xpose.msra.mxu0 0.0
    %1663 = vmatprep.subr.mxu0 0.0
    %1664 = vmatpush1.xpose.msra.mxu0 0.0
    %1665 = vmatprep.mubr.f32.mxu0 0.0
    %v1666 = vand.u32 %v25, 4294901760
    %v1667 = vsub.f32 %v25, %v1666
    %v1668 = vand.u32 %v1667, 4294901760
    %1669 = vmatmul.mubr.f32.gmra.mrb[0].mxu0 %v1668
    %v1670 = vpop.f32.mrb[0].mxu0
    %v1671 = vadd.f32 %v1590, %v1670
    %v1672 = vpop.f32.mrb[0].mxu0
    %1673 = vdwg.mxu0
    %1674 = vmatprep.subr.mxu0 0.0
    %v1675 = vand.u32 %v766, 4294901760
    %v1676 = vsub.f32 %v766, %v1675
    %v1677 = vand.u32 %v1676, 4294901760
    %1678 = vmatpush1.xpose.msra.mxu0 %v1677
    %1679 = vmatprep.subr.mxu0 0.0
    %v1680 = vand.u32 %v767, 4294901760
    %v1681 = vsub.f32 %v767, %v1680
    %v1682 = vand.u32 %v1681, 4294901760
    %1683 = vmatpush1.xpose.msra.mxu0 %v1682
    %1684 = vmatprep.subr.mxu0 0.0
    %v1685 = vand.u32 %v768, 4294901760
    %v1686 = vsub.f32 %v768, %v1685
    %v1687 = vand.u32 %v1686, 4294901760
    %1688 = vmatpush1.xpose.msra.mxu0 %v1687
    %1689 = vmatprep.subr.mxu0 0.0
    %v1690 = vand.u32 %v769, 4294901760
    %v1691 = vsub.f32 %v769, %v1690
    %v1692 = vand.u32 %v1691, 4294901760
    %1693 = vmatpush1.xpose.msra.mxu0 %v1692
    %1694 = vmatprep.subr.mxu0 0.0
    %v1695 = vand.u32 %v770, 4294901760
    %v1696 = vsub.f32 %v770, %v1695
    %v1697 = vand.u32 %v1696, 4294901760
    %1698 = vmatpush1.xpose.msra.mxu0 %v1697
    %1699 = vmatprep.subr.mxu0 0.0
    %v1700 = vand.u32 %v771, 4294901760
    %v1701 = vsub.f32 %v771, %v1700
    %v1702 = vand.u32 %v1701, 4294901760
    %1703 = vmatpush1.xpose.msra.mxu0 %v1702
    %1704 = vmatprep.subr.mxu0 0.0
    %v1705 = vand.u32 %v772, 4294901760
    %v1706 = vsub.f32 %v772, %v1705
    %v1707 = vand.u32 %v1706, 4294901760
    %1708 = vmatpush1.xpose.msra.mxu0 %v1707
    %1709 = vmatprep.subr.mxu0 0.0
    %v1710 = vand.u32 %v773, 4294901760
    %v1711 = vsub.f32 %v773, %v1710
    %v1712 = vand.u32 %v1711, 4294901760
    %1713 = vmatpush1.xpose.msra.mxu0 %v1712
    %1714 = vmatprep.subr.mxu0 0.0
    %1715 = vmatpush1.xpose.msra.mxu0 0.0
    %1716 = vmatprep.subr.mxu0 0.0
    %1717 = vmatpush1.xpose.msra.mxu0 0.0
    %1718 = vmatprep.subr.mxu0 0.0
    %1719 = vmatpush1.xpose.msra.mxu0 0.0
    %1720 = vmatprep.subr.mxu0 0.0
    %1721 = vmatpush1.xpose.msra.mxu0 0.0
    %1722 = vmatprep.subr.mxu0 0.0
    %1723 = vmatpush1.xpose.msra.mxu0 0.0
    %1724 = vmatprep.subr.mxu0 0.0
    %1725 = vmatpush1.xpose.msra.mxu0 0.0
    %1726 = vmatprep.subr.mxu0 0.0
    %1727 = vmatpush1.xpose.msra.mxu0 0.0
    %1728 = vmatprep.subr.mxu0 0.0
    %1729 = vmatpush1.xpose.msra.mxu0 0.0
    %1730 = vmatprep.subr.mxu0 0.0
    %1731 = vmatpush1.xpose.msra.mxu0 0.0
    %1732 = vmatprep.subr.mxu0 0.0
    %1733 = vmatpush1.xpose.msra.mxu0 0.0
    %1734 = vmatprep.subr.mxu0 0.0
    %1735 = vmatpush1.xpose.msra.mxu0 0.0
    %1736 = vmatprep.subr.mxu0 0.0
    %1737 = vmatpush1.xpose.msra.mxu0 0.0
    %1738 = vmatprep.subr.mxu0 0.0
    %1739 = vmatpush1.xpose.msra.mxu0 0.0
    %1740 = vmatprep.subr.mxu0 0.0
    %1741 = vmatpush1.xpose.msra.mxu0 0.0
    %1742 = vmatprep.subr.mxu0 0.0
    %1743 = vmatpush1.xpose.msra.mxu0 0.0
    %1744 = vmatprep.subr.mxu0 0.0
    %1745 = vmatpush1.xpose.msra.mxu0 0.0
    %1746 = vmatprep.subr.mxu0 0.0
    %1747 = vmatpush1.xpose.msra.mxu0 0.0
    %1748 = vmatprep.subr.mxu0 0.0
    %1749 = vmatpush1.xpose.msra.mxu0 0.0
    %1750 = vmatprep.subr.mxu0 0.0
    %1751 = vmatpush1.xpose.msra.mxu0 0.0
    %1752 = vmatprep.subr.mxu0 0.0
    %1753 = vmatpush1.xpose.msra.mxu0 0.0
    %1754 = vmatprep.subr.mxu0 0.0
    %1755 = vmatpush1.xpose.msra.mxu0 0.0
    %1756 = vmatprep.subr.mxu0 0.0
    %1757 = vmatpush1.xpose.msra.mxu0 0.0
    %1758 = vmatprep.subr.mxu0 0.0
    %1759 = vmatpush1.xpose.msra.mxu0 0.0
    %1760 = vmatprep.subr.mxu0 0.0
    %1761 = vmatpush1.xpose.msra.mxu0 0.0
    %1762 = vmatprep.mubr.f32.mxu0 0.0
    %v1763 = vand.u32 %v25, 4294901760
    %1764 = vmatmul.mubr.f32.gmra.mrb[0].mxu0 %v1763
    %v1765 = vpop.f32.mrb[0].mxu0
    %v1766 = vadd.f32 %v1671, %v1765
    %v1767 = vpop.f32.mrb[0].mxu0
    %1768 = vdwg.mxu0
    %1769 = vmatprep.subr.mxu0 0.0
    %v1770 = vand.u32 %v766, 4294901760
    %1771 = vmatpush1.xpose.msra.mxu0 %v1770
    %1772 = vmatprep.subr.mxu0 0.0
    %v1773 = vand.u32 %v767, 4294901760
    %1774 = vmatpush1.xpose.msra.mxu0 %v1773
    %1775 = vmatprep.subr.mxu0 0.0
    %v1776 = vand.u32 %v768, 4294901760
    %1777 = vmatpush1.xpose.msra.mxu0 %v1776
    %1778 = vmatprep.subr.mxu0 0.0
    %v1779 = vand.u32 %v769, 4294901760
    %1780 = vmatpush1.xpose.msra.mxu0 %v1779
    %1781 = vmatprep.subr.mxu0 0.0
    %v1782 = vand.u32 %v770, 4294901760
    %1783 = vmatpush1.xpose.msra.mxu0 %v1782
    %1784 = vmatprep.subr.mxu0 0.0
    %v1785 = vand.u32 %v771, 4294901760
    %1786 = vmatpush1.xpose.msra.mxu0 %v1785
    %1787 = vmatprep.subr.mxu0 0.0
    %v1788 = vand.u32 %v772, 4294901760
    %1789 = vmatpush1.xpose.msra.mxu0 %v1788
    %1790 = vmatprep.subr.mxu0 0.0
    %v1791 = vand.u32 %v773, 4294901760
    %1792 = vmatpush1.xpose.msra.mxu0 %v1791
    %1793 = vmatprep.subr.mxu0 0.0
    %1794 = vmatpush1.xpose.msra.mxu0 0.0
    %1795 = vmatprep.subr.mxu0 0.0
    %1796 = vmatpush1.xpose.msra.mxu0 0.0
    %1797 = vmatprep.subr.mxu0 0.0
    %1798 = vmatpush1.xpose.msra.mxu0 0.0
    %1799 = vmatprep.subr.mxu0 0.0
    %1800 = vmatpush1.xpose.msra.mxu0 0.0
    %1801 = vmatprep.subr.mxu0 0.0
    %1802 = vmatpush1.xpose.msra.mxu0 0.0
    %1803 = vmatprep.subr.mxu0 0.0
    %1804 = vmatpush1.xpose.msra.mxu0 0.0
    %1805 = vmatprep.subr.mxu0 0.0
    %1806 = vmatpush1.xpose.msra.mxu0 0.0
    %1807 = vmatprep.subr.mxu0 0.0
    %1808 = vmatpush1.xpose.msra.mxu0 0.0
    %1809 = vmatprep.subr.mxu0 0.0
    %1810 = vmatpush1.xpose.msra.mxu0 0.0
    %1811 = vmatprep.subr.mxu0 0.0
    %1812 = vmatpush1.xpose.msra.mxu0 0.0
    %1813 = vmatprep.subr.mxu0 0.0
    %1814 = vmatpush1.xpose.msra.mxu0 0.0
    %1815 = vmatprep.subr.mxu0 0.0
    %1816 = vmatpush1.xpose.msra.mxu0 0.0
    %1817 = vmatprep.subr.mxu0 0.0
    %1818 = vmatpush1.xpose.msra.mxu0 0.0
    %1819 = vmatprep.subr.mxu0 0.0
    %1820 = vmatpush1.xpose.msra.mxu0 0.0
    %1821 = vmatprep.subr.mxu0 0.0
    %1822 = vmatpush1.xpose.msra.mxu0 0.0
    %1823 = vmatprep.subr.mxu0 0.0
    %1824 = vmatpush1.xpose.msra.mxu0 0.0
    %1825 = vmatprep.subr.mxu0 0.0
    %1826 = vmatpush1.xpose.msra.mxu0 0.0
    %1827 = vmatprep.subr.mxu0 0.0
    %1828 = vmatpush1.xpose.msra.mxu0 0.0
    %1829 = vmatprep.subr.mxu0 0.0
    %1830 = vmatpush1.xpose.msra.mxu0 0.0
    %1831 = vmatprep.subr.mxu0 0.0
    %1832 = vmatpush1.xpose.msra.mxu0 0.0
    %1833 = vmatprep.subr.mxu0 0.0
    %1834 = vmatpush1.xpose.msra.mxu0 0.0
    %1835 = vmatprep.subr.mxu0 0.0
    %1836 = vmatpush1.xpose.msra.mxu0 0.0
    %1837 = vmatprep.subr.mxu0 0.0
    %1838 = vmatpush1.xpose.msra.mxu0 0.0
    %1839 = vmatprep.subr.mxu0 0.0
    %1840 = vmatpush1.xpose.msra.mxu0 0.0
    %1841 = vmatprep.mubr.f32.mxu0 0.0
    %v1842 = vand.u32 %v25, 4294901760
    %1843 = vmatmul.mubr.f32.gmra.mrb[0].mxu0 %v1842
    %v1844 = vpop.f32.mrb[0].mxu0
    %v1845 = vadd.f32 %v1766, %v1844
    %v1846 = vpop.f32.mrb[0].mxu0
    %1847 = vdwg.mxu0
    %vm1848 = vcmask 516096
    %1849 = vst.msk [vmem:[#allocation2] sm:$0x1] %vm1848, %v1308
    %vm1850 = vcmask 517121
    %1851 = vst.msk [vmem:[#allocation2] sm:$0x2] %vm1850, %v1845
    // Predicated region
    $region10: #{tpu_custom_call.1} parent=1 // pred_check
      _
    $region11: #{tpu_custom_call.1} parent=1 // pred_check_branch
      %1853 = sbr.rel (0) target = $region13
    $region12: #{tpu_custom_call.1} parent=1 // pred_region
      %s1855 = ssub.s32 32, 32
      %1856 = vsyncadd [#allocation3], %s1855
      %s1858 = sshll.u32 [#allocation2], 4
      %s1859 = int_to_ptr.vmem [resolvable:$true] %s1858
      %1861 = dma.vmem_to_hbm [thread:$0]  %s1859, 32, %s2, [#allocation3]
    $region13: #{tpu_custom_call.1} parent=1 // pred_fallthru
      _
    // Predicated region
    $region14: #{tpu_custom_call.1} parent=1 // pred_check
      _
    $region15: #{tpu_custom_call.1} parent=1 // pred_check_branch
      %1863 = sbr.rel (0) target = $region17
    $region16: #{tpu_custom_call.1} parent=1 // pred_region
      %1864 = dma.done [#allocation3], 32
    $region17: #{tpu_custom_call.1} parent=1 // pred_fallthru
      _
    %1865 = vsyncpa [#allocation3], 1

</llo_original>
